<compile_context>
chip_gen: v6e
topology: v6e:2x2x1
jax: 0.10.0
libtpu: 0.0.40
codegen_flags: <defaults>
</compile_context>

<pallas_src>
import math

import jax
import jax.numpy as jnp
from jax.experimental import pallas as pl
from jax.experimental.pallas import tpu as pltpu

_TWO_PI = 2.0 * math.pi
_N_HARMONICS = 8
_SLOPE = 0.01
_ENV_K = -0.5 / (_TWO_PI * _TWO_PI)          # exp(-0.5 r^2) = exp(_ENV_K * (2*pi*r)^2)
# Sawtooth Fourier coefficients a_n = (2/pi) * (-1)^(n+1) / n
_A = [0.0] + [(2.0 / math.pi) * (((-1.0) ** (n + 1)) / n)
              for n in range(1, _N_HARMONICS + 1)]


def _make_kernel(n_chunks, ch):
    """Kernel closure: grid = (n_tiles,); basis chunks looped in-kernel."""

    def kernel(gx_ref, gy_ref, sx_ref, sy_ref, isc_ref, coef_ref, out_ref):
        gx = gx_ref[...]                       # (1, TILE)
        gy = gy_ref[...]
        out_ref[...] = jnp.zeros_like(out_ref)  # f32 accumulator in the out block

        def chunk_body(c, carry):
            sx = sx_ref[c]                      # (CH, 1)
            sy = sy_ref[c]
            isc = isc_ref[c]                    # (CH, 1), already 2*pi / |scale|
            coef = coef_ref[c]                  # (3, 2*CH)  [csin | ccos], pre-normalized

            u = (gx - sx) * isc                 # (CH, TILE) == 2*pi*u_torch
            v = (gy - sy) * isc
            r2 = u * u + v * v                  # (2*pi*r)^2
            theta = jnp.sqrt(r2)                # 2*pi*r
            s1 = jnp.sin(theta)
            c1 = jnp.cos(theta)
            two_c1 = c1 + c1

            # n = 1: sine variant uses sin(theta); cosine variant sin(theta+pi/2)=cos.
            saw_sin = _A[1] * s1
            saw_cos = _A[1] * c1
            # n = 2 (peeled Chebyshev step: s0 = 0, c0 = 1).
            s2 = two_c1 * s1
            c2 = two_c1 * c1 - 1.0
            saw_sin = saw_sin + _A[2] * s2
            saw_cos = saw_cos - _A[2] * s2      # sin(2t + pi) = -sin(2t)
            s_nm2, s_nm1 = s1, s2
            c_nm2, c_nm1 = c1, c2
            for n in range(3, _N_HARMONICS + 1):
                s_n = two_c1 * s_nm1 - s_nm2    # sin(n*theta)
                c_n = two_c1 * c_nm1 - c_nm2    # cos(n*theta)
                saw_sin = saw_sin + _A[n] * s_n
                q = n % 4                       # sin(n*theta + n*pi/2), signs folded
                if q == 0:
                    saw_cos = saw_cos + _A[n] * s_n
                elif q == 1:
                    saw_cos = saw_cos + _A[n] * c_n
                elif q == 2:
                    saw_cos = saw_cos - _A[n] * s_n
                else:
                    saw_cos = saw_cos - _A[n] * c_n
                s_nm2, s_nm1 = s_nm1, s_n
                c_nm2, c_nm1 = c_nm1, c_n

            env = jnp.exp(_ENV_K * r2)          # torch: envelope only on sine variant
            basis = jnp.concatenate([saw_sin * env, saw_cos], axis=0)  # (2*CH, TILE)
            out_ref[...] += jnp.dot(coef, basis, preferred_element_type=jnp.float32)
            return carry

        if n_chunks <= 8:
            for c in range(n_chunks):           # fully unrolled at trace time
                chunk_body(c, 0)
        else:
            jax.lax.fori_loop(0, n_chunks, chunk_body, 0)

        # HardLeakySigmoid on the final accumulator.
        o = out_ref[...]
        m = _SLOPE
        f = jnp.where(o <= -1.0, m * (o + 1.0) - 1.0,
                      jnp.where(o > 1.0, m * (o - 1.0) + 1.0, o))
        out_ref[...] = jnp.maximum(0.5 * (f + 1.0), m * o)

    return kernel


def make_wavelet_params(spatial_depth, scale_depth, boundx=1.0, boundy=1.0,
                        key=jax.random.PRNGKey(42)):
    S, Sd = spatial_depth, scale_depth
    tile_wx = 2.0 * boundx / S
    tile_wy = 2.0 * boundy / S
    shifts_x = -boundx + tile_wx * (0.5 + jnp.arange(S, dtype=jnp.float32))
    shifts_y = -boundy + tile_wy * (0.5 + jnp.arange(S, dtype=jnp.float32))
    freqs = jnp.array([2.0 ** (n / 2.0) for n in range(Sd)], dtype=jnp.float32)
    scales = 1.0 / freqs
    inv_scales = 1.0 / jnp.clip(jnp.abs(scales), 1e-4, None)
    num_bases = S * S * Sd * 2
    wavelet_coefficients = jax.random.normal(key, (1, 3, num_bases),
                                             dtype=jnp.float32)
    return dict(shifts_x=shifts_x, shifts_y=shifts_y, inv_scales=inv_scales,
                coeffs=wavelet_coefficients, spatial_depth=S, scale_depth=Sd,
                boundx=boundx, boundy=boundy, num_bases=num_bases)


def _round_up(x, m):
    return (x + m - 1) // m * m


def wavelet_image_synthesis(x, params, *, max_tile=4096, chunk=64):
    B, C, H, W = x.shape
    assert C == 3, "wavelet coefficients have 3 channels"
    S = params["spatial_depth"]
    Sd = params["scale_depth"]
    HW = H * W
    M = S * S * Sd                         # number of (sine, cosine) basis pairs

    # ---- spatial tile: lane-dense, >= 2 tiles when possible (v7x megacore) ----
    tile_cap = max(128, _round_up(HW, 256) // 2)
    TILE = min(max_tile, _round_up(HW, 128), tile_cap)
    HW_pad = _round_up(HW, TILE)
    n_tiles = HW_pad // TILE

    xs = jnp.linspace(-params["boundx"], params["boundx"], W, dtype=jnp.float32)
    ys = jnp.linspace(-params["boundy"], params["boundy"], H, dtype=jnp.float32)
    grid_y, grid_x = jnp.meshgrid(ys, xs, indexing="ij")
    gx = jnp.pad(grid_x.reshape(1, HW), ((0, 0), (0, HW_pad - HW)))
    gy = jnp.pad(grid_y.reshape(1, HW), ((0, 0), (0, HW_pad - HW)))

    # ---- per-pair parameters, ordered m = (i * S + j) * Sd + k_scale ----
    ii, jj, kk = jnp.meshgrid(jnp.arange(S), jnp.arange(S), jnp.arange(Sd),
                              indexing="ij")
    sx = params["shifts_x"][ii.reshape(M)]
    sy = params["shifts_y"][jj.reshape(M)]
    isc = _TWO_PI * params["inv_scales"][kk.reshape(M)]   # fold 2*pi here

    # ---- coefficients: split sine/cosine halves, fold 1/norm ----
    # torch basis index n = (i*S + j)*(2*Sd) + k : k < Sd -> sine variant,
    # k >= Sd -> cosine variant (scale index k - Sd).
    coef = params["coeffs"][0]                                  # (3, N)
    # NOTE: matches torch exactly, but the sum of i.i.d. normals can be near 0
    # and blow up a channel -- numerically fragile by construction.
    inv_norm = 1.0 / jnp.sum(coef, axis=1, keepdims=True)       # (3, 1)
    coef_r = coef.reshape(3, S * S, 2, Sd)
    csin = coef_r[:, :, 0, :].reshape(3, M) * inv_norm          # (3, M)
    ccos = coef_r[:, :, 1, :].reshape(3, M) * inv_norm

    CH = min(chunk, _round_up(M, 8))       # multiple of 8 (f32 sublane alignment)
    M_pad = _round_up(M, CH)
    n_chunks = M_pad // CH

    def param_blocks(v):                   # (M,) -> (n_chunks, CH, 1)
        vp = jnp.zeros((M_pad,), jnp.float32).at[:M].set(v.astype(jnp.float32))
        return vp.reshape(n_chunks, CH, 1)

    def coef_blocks(cm):                   # (3, M) -> (n_chunks, 3, CH)
        cp = jnp.zeros((3, M_pad), jnp.float32).at[:, :M].set(cm)
        return cp.reshape(3, n_chunks, CH).transpose(1, 0, 2)

    sx_b, sy_b, isc_b = param_blocks(sx), param_blocks(sy), param_blocks(isc)
    coef_b = jnp.concatenate([coef_blocks(csin), coef_blocks(ccos)], axis=2)
    # coef_b: (n_chunks, 3, 2*CH), columns [csin | ccos] matching the fused basis.

    full = lambda i: (0, 0, 0)             # VMEM-resident, DMA'd once (revisit-skip)
    out2d = pl.pallas_call(
        _make_kernel(n_chunks, CH),
        out_shape=jax.ShapeDtypeStruct((3, HW_pad), jnp.float32),
        grid_spec=pltpu.PrefetchScalarGridSpec(
            num_scalar_prefetch=0,
            grid=(n_tiles,),
            in_specs=[
                pl.BlockSpec((1, TILE), lambda i: (0, i)),           # gx tile
                pl.BlockSpec((1, TILE), lambda i: (0, i)),           # gy tile
                pl.BlockSpec((n_chunks, CH, 1), full),               # sx (resident)
                pl.BlockSpec((n_chunks, CH, 1), full),               # sy (resident)
                pl.BlockSpec((n_chunks, CH, 1), full),               # 2*pi/scale
                pl.BlockSpec((n_chunks, 3, 2 * CH), full),           # fused coeffs
            ],
            out_specs=pl.BlockSpec((3, TILE), lambda i: (0, i)),
        ),
        compiler_params=pltpu.CompilerParams(
            dimension_semantics=("parallel",)),
    )(gx, gy, sx_b, sy_b, isc_b, coef_b)

    out = out2d[:, :HW].reshape(3, H, W)
    # identical for every batch element (coeffs & basis are batch-expanded in torch)
    return jnp.broadcast_to(out[None], (B, 3, H, W)).astype(x.dtype)


def _reference(x, params):
    """Pure-JAX reference reproducing the torch forward (no recurrences)."""
    B, C, H, W = x.shape
    S, Sd = params["spatial_depth"], params["scale_depth"]
    xs = jnp.linspace(-params["boundx"], params["boundx"], W, dtype=jnp.float32)
    ys = jnp.linspace(-params["boundy"], params["boundy"], H, dtype=jnp.float32)
    grid_y, grid_x = jnp.meshgrid(ys, xs, indexing="ij")
    gx = grid_x.reshape(1, 1, 1, H, W)
    gy = grid_y.reshape(1, 1, 1, H, W)
    sx = params["shifts_x"].reshape(S, 1, 1, 1, 1)
    sy = params["shifts_y"].reshape(1, S, 1, 1, 1)
    isc = params["inv_scales"].reshape(1, 1, Sd, 1, 1)
    u = (gx - sx) * isc
    v = (gy - sy) * isc
    r = jnp.sqrt(u * u + v * v)

    def saw(rr):
        s = 0.0
        for n in range(1, 9):
            s = s + 2.0 / math.pi * (((-1.0) ** (n + 1)) / n) * jnp.sin(
                2.0 * math.pi * n * rr)
        return s

    basis_sin = saw(r) * jnp.exp(-0.5 * r * r)
    basis_cos = saw(r + 0.25)
    basis = jnp.concatenate([basis_sin, basis_cos], axis=2)
    basis = basis.reshape(params["num_bases"], H, W)
    coeffs = params["coeffs"][0]
    out = jnp.einsum("cn,nhw->chw", coeffs, basis)
    norm = coeffs.sum(axis=1).reshape(3, 1, 1)
    out = out / norm
    m = 0.01
    f = jnp.where(out <= -1, m * (out + 1) - 1,
                  jnp.where(out > 1, m * (out - 1) + 1, out))
    out = jnp.maximum(0.5 * (f + 1), m * out)
    return jnp.broadcast_to(out[None], (B, 3, H, W))


if __name__ == "__main__":
    B, C, H, W = 2, 3, 16, 16
    spatial_depth, scale_depth = 4, 2

    key = jax.random.PRNGKey(0)
    x = jax.random.normal(key, (B, C, H, W), dtype=jnp.float32)

    params = make_wavelet_params(spatial_depth, scale_depth,
                                 key=jax.random.PRNGKey(42))

    out = jax.block_until_ready(wavelet_image_synthesis(x, params))
    ref = jax.block_until_ready(_reference(x, params))

    assert out.shape == (B, 3, H, W)
    assert jnp.allclose(out, ref, rtol=2e-3, atol=2e-3), "mismatch vs reference"

    print("KERNEL_OK")
</pallas_src>

<mosaic_0001>
module attributes {stable_mosaic.version = 11 : i64} {
  func.func @kernel(%arg0: i32, %arg1: memref<1x128xf32, #tpu.memory_space<vmem>>, %arg2: memref<1x128xf32, #tpu.memory_space<vmem>>, %arg3: memref<1x32x1xf32, #tpu.memory_space<vmem>>, %arg4: memref<1x32x1xf32, #tpu.memory_space<vmem>>, %arg5: memref<1x32x1xf32, #tpu.memory_space<vmem>>, %arg6: memref<1x3x64xf32, #tpu.memory_space<vmem>>, %arg7: memref<3x128xf32, #tpu.memory_space<vmem>>) attributes {dimension_semantics = [#tpu.dimension_semantics<parallel>], iteration_bounds = array<i64: 2>, scalar_prefetch = 0 : i64, scratch_operands = 0 : i64, tpu.core_type = #tpu.core_type<tc>, window_params = [{transform_indices = @transform_0, window_bounds = array<i64: 1, 128>}, {transform_indices = @transform_1, window_bounds = array<i64: 1, 128>}, {pipeline_mode = #tpu.pipeline_mode<synchronous>, transform_indices = @transform_2, window_bounds = array<i64: 1, 32, 1>}, {pipeline_mode = #tpu.pipeline_mode<synchronous>, transform_indices = @transform_3, window_bounds = array<i64: 1, 32, 1>}, {pipeline_mode = #tpu.pipeline_mode<synchronous>, transform_indices = @transform_4, window_bounds = array<i64: 1, 32, 1>}, {pipeline_mode = #tpu.pipeline_mode<synchronous>, transform_indices = @transform_5, window_bounds = array<i64: 1, 3, 64>}, {transform_indices = @transform_6, window_bounds = array<i64: 3, 128>}]} {
    %c0 = arith.constant 0 : index
    %c0_0 = arith.constant 0 : index
    %0 = vector.load %arg1[%c0, %c0_0] : memref<1x128xf32, #tpu.memory_space<vmem>>, vector<1x128xf32>
    %c0_1 = arith.constant 0 : index
    %c0_2 = arith.constant 0 : index
    %1 = vector.load %arg2[%c0_1, %c0_2] : memref<1x128xf32, #tpu.memory_space<vmem>>, vector<1x128xf32>
    %cst = arith.constant 0.000000e+00 : f32
    %2 = vector.broadcast %cst : f32 to vector<3x128xf32>
    %c0_3 = arith.constant 0 : index
    %c0_4 = arith.constant 0 : index
    %3 = vector.load %arg7[%c0_3, %c0_4] : memref<3x128xf32, #tpu.memory_space<vmem>>, vector<3x128xf32>
    tpu.vector_store %arg7[%c0_3, %c0_4], %2 {strides = array<i32>} : memref<3x128xf32, #tpu.memory_space<vmem>>, vector<3x128xf32>,
    %c0_5 = arith.constant 0 : index
    %c0_6 = arith.constant 0 : index
    %c0_7 = arith.constant 0 : index
    %4 = vector.load %arg3[%c0_5, %c0_6, %c0_7] : memref<1x32x1xf32, #tpu.memory_space<vmem>>, vector<1x32x1xf32>
    %5 = vector.shape_cast %4 : vector<1x32x1xf32> to vector<32x1xf32>
    %c0_8 = arith.constant 0 : index
    %c0_9 = arith.constant 0 : index
    %c0_10 = arith.constant 0 : index
    %6 = vector.load %arg4[%c0_8, %c0_9, %c0_10] : memref<1x32x1xf32, #tpu.memory_space<vmem>>, vector<1x32x1xf32>
    %7 = vector.shape_cast %6 : vector<1x32x1xf32> to vector<32x1xf32>
    %c0_11 = arith.constant 0 : index
    %c0_12 = arith.constant 0 : index
    %c0_13 = arith.constant 0 : index
    %8 = vector.load %arg5[%c0_11, %c0_12, %c0_13] : memref<1x32x1xf32, #tpu.memory_space<vmem>>, vector<1x32x1xf32>
    %9 = vector.shape_cast %8 : vector<1x32x1xf32> to vector<32x1xf32>
    %c0_14 = arith.constant 0 : index
    %c0_15 = arith.constant 0 : index
    %c0_16 = arith.constant 0 : index
    %10 = vector.load %arg6[%c0_14, %c0_15, %c0_16] : memref<1x3x64xf32, #tpu.memory_space<vmem>>, vector<1x3x64xf32>
    %11 = vector.shape_cast %10 : vector<1x3x64xf32> to vector<3x64xf32>
    %12 = vector.broadcast %0 : vector<1x128xf32> to vector<32x128xf32>
    %13 = vector.broadcast %5 : vector<32x1xf32> to vector<32x128xf32>
    %14 = arith.subf %12, %13 : vector<32x128xf32>
    %15 = vector.broadcast %9 : vector<32x1xf32> to vector<32x128xf32>
    %16 = arith.mulf %14, %15 : vector<32x128xf32>
    %17 = vector.broadcast %1 : vector<1x128xf32> to vector<32x128xf32>
    %18 = vector.broadcast %7 : vector<32x1xf32> to vector<32x128xf32>
    %19 = arith.subf %17, %18 : vector<32x128xf32>
    %20 = vector.broadcast %9 : vector<32x1xf32> to vector<32x128xf32>
    %21 = arith.mulf %19, %20 : vector<32x128xf32>
    %22 = arith.mulf %16, %16 : vector<32x128xf32>
    %23 = arith.mulf %21, %21 : vector<32x128xf32>
    %24 = arith.addf %22, %23 : vector<32x128xf32>
    %25 = math.sqrt %24 : vector<32x128xf32>
    %26 = math.sin %25 : vector<32x128xf32>
    %27 = math.cos %25 : vector<32x128xf32>
    %28 = arith.addf %27, %27 : vector<32x128xf32>
    %cst_17 = arith.constant 0.636619746 : f32
    %29 = vector.broadcast %cst_17 : f32 to vector<32x128xf32>
    %30 = arith.mulf %29, %26 : vector<32x128xf32>
    %cst_18 = arith.constant 0.636619746 : f32
    %31 = vector.broadcast %cst_18 : f32 to vector<32x128xf32>
    %32 = arith.mulf %31, %27 : vector<32x128xf32>
    %33 = arith.mulf %28, %26 : vector<32x128xf32>
    %34 = arith.mulf %28, %27 : vector<32x128xf32>
    %cst_19 = arith.constant 1.000000e+00 : f32
    %35 = vector.broadcast %cst_19 : f32 to vector<32x128xf32>
    %36 = arith.subf %34, %35 : vector<32x128xf32>
    %cst_20 = arith.constant -0.318309873 : f32
    %37 = vector.broadcast %cst_20 : f32 to vector<32x128xf32>
    %38 = arith.mulf %37, %33 : vector<32x128xf32>
    %39 = arith.addf %30, %38 : vector<32x128xf32>
    %cst_21 = arith.constant -0.318309873 : f32
    %40 = vector.broadcast %cst_21 : f32 to vector<32x128xf32>
    %41 = arith.mulf %40, %33 : vector<32x128xf32>
    %42 = arith.subf %32, %41 : vector<32x128xf32>
    %43 = arith.mulf %28, %33 : vector<32x128xf32>
    %44 = arith.subf %43, %26 : vector<32x128xf32>
    %45 = arith.mulf %28, %36 : vector<32x128xf32>
    %46 = arith.subf %45, %27 : vector<32x128xf32>
    %cst_22 = arith.constant 0.212206587 : f32
    %47 = vector.broadcast %cst_22 : f32 to vector<32x128xf32>
    %48 = arith.mulf %47, %44 : vector<32x128xf32>
    %49 = arith.addf %39, %48 : vector<32x128xf32>
    %cst_23 = arith.constant 0.212206587 : f32
    %50 = vector.broadcast %cst_23 : f32 to vector<32x128xf32>
    %51 = arith.mulf %50, %46 : vector<32x128xf32>
    %52 = arith.subf %42, %51 : vector<32x128xf32>
    %53 = arith.mulf %28, %44 : vector<32x128xf32>
    %54 = arith.subf %53, %33 : vector<32x128xf32>
    %55 = arith.mulf %28, %46 : vector<32x128xf32>
    %56 = arith.subf %55, %36 : vector<32x128xf32>
    %cst_24 = arith.constant -0.159154937 : f32
    %57 = vector.broadcast %cst_24 : f32 to vector<32x128xf32>
    %58 = arith.mulf %57, %54 : vector<32x128xf32>
    %59 = arith.addf %49, %58 : vector<32x128xf32>
    %cst_25 = arith.constant -0.159154937 : f32
    %60 = vector.broadcast %cst_25 : f32 to vector<32x128xf32>
    %61 = arith.mulf %60, %54 : vector<32x128xf32>
    %62 = arith.addf %52, %61 : vector<32x128xf32>
    %63 = arith.mulf %28, %54 : vector<32x128xf32>
    %64 = arith.subf %63, %44 : vector<32x128xf32>
    %65 = arith.mulf %28, %56 : vector<32x128xf32>
    %66 = arith.subf %65, %46 : vector<32x128xf32>
    %cst_26 = arith.constant 0.127323955 : f32
    %67 = vector.broadcast %cst_26 : f32 to vector<32x128xf32>
    %68 = arith.mulf %67, %64 : vector<32x128xf32>
    %69 = arith.addf %59, %68 : vector<32x128xf32>
    %cst_27 = arith.constant 0.127323955 : f32
    %70 = vector.broadcast %cst_27 : f32 to vector<32x128xf32>
    %71 = arith.mulf %70, %66 : vector<32x128xf32>
    %72 = arith.addf %62, %71 : vector<32x128xf32>
    %73 = arith.mulf %28, %64 : vector<32x128xf32>
    %74 = arith.subf %73, %54 : vector<32x128xf32>
    %75 = arith.mulf %28, %66 : vector<32x128xf32>
    %76 = arith.subf %75, %56 : vector<32x128xf32>
    %cst_28 = arith.constant -0.106103294 : f32
    %77 = vector.broadcast %cst_28 : f32 to vector<32x128xf32>
    %78 = arith.mulf %77, %74 : vector<32x128xf32>
    %79 = arith.addf %69, %78 : vector<32x128xf32>
    %cst_29 = arith.constant -0.106103294 : f32
    %80 = vector.broadcast %cst_29 : f32 to vector<32x128xf32>
    %81 = arith.mulf %80, %74 : vector<32x128xf32>
    %82 = arith.subf %72, %81 : vector<32x128xf32>
    %83 = arith.mulf %28, %74 : vector<32x128xf32>
    %84 = arith.subf %83, %64 : vector<32x128xf32>
    %85 = arith.mulf %28, %76 : vector<32x128xf32>
    %86 = arith.subf %85, %66 : vector<32x128xf32>
    %cst_30 = arith.constant 0.0909456834 : f32
    %87 = vector.broadcast %cst_30 : f32 to vector<32x128xf32>
    %88 = arith.mulf %87, %84 : vector<32x128xf32>
    %89 = arith.addf %79, %88 : vector<32x128xf32>
    %cst_31 = arith.constant 0.0909456834 : f32
    %90 = vector.broadcast %cst_31 : f32 to vector<32x128xf32>
    %91 = arith.mulf %90, %86 : vector<32x128xf32>
    %92 = arith.subf %82, %91 : vector<32x128xf32>
    %93 = arith.mulf %28, %84 : vector<32x128xf32>
    %94 = arith.subf %93, %74 : vector<32x128xf32>
    %cst_32 = arith.constant -0.0795774683 : f32
    %95 = vector.broadcast %cst_32 : f32 to vector<32x128xf32>
    %96 = arith.mulf %95, %94 : vector<32x128xf32>
    %97 = arith.addf %89, %96 : vector<32x128xf32>
    %cst_33 = arith.constant -0.0795774683 : f32
    %98 = vector.broadcast %cst_33 : f32 to vector<32x128xf32>
    %99 = arith.mulf %98, %94 : vector<32x128xf32>
    %100 = arith.addf %92, %99 : vector<32x128xf32>
    %cst_34 = arith.constant -0.0126651479 : f32
    %101 = vector.broadcast %cst_34 : f32 to vector<32x128xf32>
    %102 = arith.mulf %101, %24 : vector<32x128xf32>
    %103 = math.exp %102 : vector<32x128xf32>
    %104 = arith.mulf %97, %103 : vector<32x128xf32>
    %105 = tpu.concatenate %104, %100 in 0 : vector<32x128xf32>, vector<32x128xf32> -> vector<64x128xf32>
    %c0_35 = arith.constant 0 : index
    %c0_36 = arith.constant 0 : index
    %106 = vector.load %arg7[%c0_35, %c0_36] : memref<3x128xf32, #tpu.memory_space<vmem>>, vector<3x128xf32>
    %cst_37 = arith.constant dense<0.000000e+00> : vector<3x128xf32>
    %107 = tpu.matmul %11, %105, %cst_37 {dimension_numbers = #tpu.dot_dimension_numbers<[1], [0], [0], [1], [0, 0, 1, 1], [], []>} : vector<3x64xf32>, vector<64x128xf32>, vector<3x128xf32> -> vector<3x128xf32>
    %108 = arith.addf %106, %107 : vector<3x128xf32>
    %c0_38 = arith.constant 0 : index
    %c0_39 = arith.constant 0 : index
    %109 = vector.load %arg7[%c0_38, %c0_39] : memref<3x128xf32, #tpu.memory_space<vmem>>, vector<3x128xf32>
    tpu.vector_store %arg7[%c0_38, %c0_39], %108 {strides = array<i32>} : memref<3x128xf32, #tpu.memory_space<vmem>>, vector<3x128xf32>,
    %c0_40 = arith.constant 0 : index
    %c0_41 = arith.constant 0 : index
    %110 = vector.load %arg7[%c0_40, %c0_41] : memref<3x128xf32, #tpu.memory_space<vmem>>, vector<3x128xf32>
    %cst_42 = arith.constant -1.000000e+00 : f32
    %111 = vector.broadcast %cst_42 : f32 to vector<3x128xf32>
    %112 = arith.cmpf ole, %110, %111 : vector<3x128xf32>
    %cst_43 = arith.constant 1.000000e+00 : f32
    %113 = vector.broadcast %cst_43 : f32 to vector<3x128xf32>
    %114 = arith.addf %110, %113 : vector<3x128xf32>
    %cst_44 = arith.constant 0.00999999977 : f32
    %115 = vector.broadcast %cst_44 : f32 to vector<3x128xf32>
    %116 = arith.mulf %115, %114 : vector<3x128xf32>
    %cst_45 = arith.constant 1.000000e+00 : f32
    %117 = vector.broadcast %cst_45 : f32 to vector<3x128xf32>
    %118 = arith.subf %116, %117 : vector<3x128xf32>
    %cst_46 = arith.constant 1.000000e+00 : f32
    %119 = vector.broadcast %cst_46 : f32 to vector<3x128xf32>
    %120 = arith.cmpf ogt, %110, %119 : vector<3x128xf32>
    %cst_47 = arith.constant 1.000000e+00 : f32
    %121 = vector.broadcast %cst_47 : f32 to vector<3x128xf32>
    %122 = arith.subf %110, %121 : vector<3x128xf32>
    %cst_48 = arith.constant 0.00999999977 : f32
    %123 = vector.broadcast %cst_48 : f32 to vector<3x128xf32>
    %124 = arith.mulf %123, %122 : vector<3x128xf32>
    %cst_49 = arith.constant 1.000000e+00 : f32
    %125 = vector.broadcast %cst_49 : f32 to vector<3x128xf32>
    %126 = arith.addf %124, %125 : vector<3x128xf32>
    %127 = arith.select %120, %126, %110 : vector<3x128xi1>, vector<3x128xf32>
    %128 = arith.select %112, %118, %127 : vector<3x128xi1>, vector<3x128xf32>
    %cst_50 = arith.constant 1.000000e+00 : f32
    %129 = vector.broadcast %cst_50 : f32 to vector<3x128xf32>
    %130 = arith.addf %128, %129 : vector<3x128xf32>
    %cst_51 = arith.constant 5.000000e-01 : f32
    %131 = vector.broadcast %cst_51 : f32 to vector<3x128xf32>
    %132 = arith.mulf %131, %130 : vector<3x128xf32>
    %cst_52 = arith.constant 0.00999999977 : f32
    %133 = vector.broadcast %cst_52 : f32 to vector<3x128xf32>
    %134 = arith.mulf %133, %110 : vector<3x128xf32>
    %135 = arith.maximumf %132, %134 : vector<3x128xf32>
    %c0_53 = arith.constant 0 : index
    %c0_54 = arith.constant 0 : index
    %136 = vector.load %arg7[%c0_53, %c0_54] : memref<3x128xf32, #tpu.memory_space<vmem>>, vector<3x128xf32>
    tpu.vector_store %arg7[%c0_53, %c0_54], %135 {strides = array<i32>} : memref<3x128xf32, #tpu.memory_space<vmem>>, vector<3x128xf32>,
    return
  }
  func.func @transform_0(%arg0: i32) -> (i32, i32) {
    %c0_i32 = arith.constant 0 : i32
    %c0_i32_0 = arith.constant 0 : i32
    return %c0_i32, %arg0 : i32, i32
  }
  func.func @transform_1(%arg0: i32) -> (i32, i32) {
    %c0_i32 = arith.constant 0 : i32
    %c0_i32_0 = arith.constant 0 : i32
    return %c0_i32, %arg0 : i32, i32
  }
  func.func @transform_2(%arg0: i32) -> (i32, i32, i32) {
    %c0_i32 = arith.constant 0 : i32
    %c0_i32_0 = arith.constant 0 : i32
    %c0_i32_1 = arith.constant 0 : i32
    %c0_i32_2 = arith.constant 0 : i32
    return %c0_i32, %c0_i32_0, %c0_i32_1 : i32, i32, i32
  }
  func.func @transform_3(%arg0: i32) -> (i32, i32, i32) {
    %c0_i32 = arith.constant 0 : i32
    %c0_i32_0 = arith.constant 0 : i32
    %c0_i32_1 = arith.constant 0 : i32
    %c0_i32_2 = arith.constant 0 : i32
    return %c0_i32, %c0_i32_0, %c0_i32_1 : i32, i32, i32
  }
  func.func @transform_4(%arg0: i32) -> (i32, i32, i32) {
    %c0_i32 = arith.constant 0 : i32
    %c0_i32_0 = arith.constant 0 : i32
    %c0_i32_1 = arith.constant 0 : i32
    %c0_i32_2 = arith.constant 0 : i32
    return %c0_i32, %c0_i32_0, %c0_i32_1 : i32, i32, i32
  }
  func.func @transform_5(%arg0: i32) -> (i32, i32, i32) {
    %c0_i32 = arith.constant 0 : i32
    %c0_i32_0 = arith.constant 0 : i32
    %c0_i32_1 = arith.constant 0 : i32
    %c0_i32_2 = arith.constant 0 : i32
    return %c0_i32, %c0_i32_0, %c0_i32_1 : i32, i32, i32
  }
  func.func @transform_6(%arg0: i32) -> (i32, i32) {
    %c0_i32 = arith.constant 0 : i32
    %c0_i32_0 = arith.constant 0 : i32
    return %c0_i32, %arg0 : i32, i32
  }
}

</mosaic_0001>

<llo_original>
// kernel: tpu_custom_call.1
$region0: #{tpu_custom_call.1}
  #allocation0 [shape = 'u32[]', space=smem, size = 0x4, offset = 0x4, fixed_abs, tag = 'smem constant byte address 0x4 - core index']
  #allocation1 [shape = 'u32[144,128]{1,0:T(1,128)}', space=vmem, size = 0x12000, scoped, tag = 'internal scratch']
  %s0 = inlined_call_operand.vmem [shape: f32[1,256], index: 0, kind: input, shape index: {}]
  %s1 = inlined_call_operand.vmem [shape: f32[1,256], index: 1, kind: input, shape index: {}]
  %s2 = inlined_call_operand.vmem [shape: f32[1,32,1], index: 2, kind: input, shape index: {}]
  %s3 = inlined_call_operand.vmem [shape: f32[1,32,1], index: 3, kind: input, shape index: {}]
  %s4 = inlined_call_operand.vmem [shape: f32[1,32,1], index: 4, kind: input, shape index: {}]
  %s5 = inlined_call_operand.vmem [shape: f32[1,3,64], index: 5, kind: input, shape index: {}]
  %s6 = inlined_call_operand.hbm [shape: f32[3,256], index: 6, kind: output, shape index: {}]
  %s7 = sld [smem:[#allocation0]]
  $region57: #{tpu_custom_call.1} parent=0
    _
  %s9 = ssub.s32 1, %s7
  %s10 = scalar_select 0, %s9, %s7
  $region1: #{tpu_custom_call.1} parent=0
    #allocation2 [shape = 'u8[4096]{0}', space=vmem, size = 0x1000, scoped, tag = 'output window, operand 0']
    #allocation3 [shape = 's32[2]{0}', space=sflag, size = 0x8, scoped, tag = 'scoped memory for tpu_custom_call.1']
    %11 = vsyncpa [#allocation3], 0
    %s12 = scalar_lea.sflag [#allocation3], 1
    %13 = vsyncpa %s12, 0
    loop: start=0, step=1, limit=4
    $region2: #{tpu_custom_call.1} parent=1 // loop_pre_header
      _
    $region3: #{tpu_custom_call.1} parent=1 // loop_header
      %s15 = sphi 0, %s19
      %p16 = scmp.ge.s32.totalorder %s15, 4
      %s25 = sphi 0, %s27
      %s28 = sphi 0, %s25
      %s29 = sphi 0, %s28
      %s45 = sphi 0, %s29
      %s51 = sphi 0, %s53
      %s54 = sphi 0, %s51
      %s55 = sphi 0, %s54
      %s71 = sphi 0, %s55
      %s75 = sphi 0, %s75
      %s77 = sphi 0, %s75
      %s78 = sphi 0, %s77
      %s92 = sphi 0, %s78
      %s96 = sphi 0, %s96
      %s98 = sphi 0, %s96
      %s99 = sphi 0, %s98
      %s113 = sphi 0, %s99
      %s117 = sphi 0, %s117
      %s119 = sphi 0, %s117
      %s120 = sphi 0, %s119
      %s134 = sphi 0, %s120
      %s138 = sphi 0, %s138
      %s140 = sphi 0, %s138
      %s141 = sphi 0, %s140
      %s155 = sphi 0, %s141
      %s161 = sphi 0, %s163
      %s164 = sphi 0, %s161
      %s165 = sphi 0, %s164
      %s181 = sphi 0, %s165
    $region4: #{tpu_custom_call.1} parent=1 // loop_header_branch
      %18 = sbr.rel (%p16) target = $region8
    $region5: #{tpu_custom_call.1} parent=1 // loop_body
      %s20 = ssub.s32 %s15, 1
      %s21 = ssub.s32 %s15, 2
      %s22 = sadd.s32 %s15, 1
      %s23 = ssub.s32 %s15, %s22
      %p24 = scmp.eq.s32.totalorder %s23, 0
      %s26 = sadd.s32 %s25, 1
      %s27 = scalar_select %p24, %s25, %s26
      %p30 = pneg %p24
      %p31 = scmp.eq.s32.totalorder %s15, 1
      %p32 = por %p30, %p31
      %p33 = scmp.ne.s32.totalorder %s25, %s28
      %p34 = scmp.eq.s32.totalorder %s15, 0
      %p35 = por %p33, %p34
      %p36 = scmp.ne.s32.totalorder %s25, %s28
      %p37 = scmp.eq.s32.totalorder %s20, 1
      %p38 = por %p36, %p37
      %p39 = scmp.ne.s32.totalorder %s28, %s29
      %p40 = scmp.eq.s32.totalorder %s20, 0
      %p41 = por %p39, %p40
      %p42 = scmp.ne.s32.totalorder %s28, %s29
      %p43 = scmp.eq.s32.totalorder %s21, 1
      %p44 = por %p42, %p43
      %p46 = scmp.ne.s32.totalorder %s29, %s45
      %p47 = scmp.eq.s32.totalorder %s21, 0
      %p48 = por %p46, %p47
      %s49 = ssub.s32 %s15, %s22
      %p50 = scmp.eq.s32.totalorder %s49, 0
      %s52 = sadd.s32 %s51, 1
      %s53 = scalar_select %p50, %s51, %s52
      %p56 = pneg %p50
      %p57 = scmp.eq.s32.totalorder %s15, 1
      %p58 = por %p56, %p57
      %p59 = scmp.ne.s32.totalorder %s51, %s54
      %p60 = scmp.eq.s32.totalorder %s15, 0
      %p61 = por %p59, %p60
      %p62 = scmp.ne.s32.totalorder %s51, %s54
      %p63 = scmp.eq.s32.totalorder %s20, 1
      %p64 = por %p62, %p63
      %p65 = scmp.ne.s32.totalorder %s54, %s55
      %p66 = scmp.eq.s32.totalorder %s20, 0
      %p67 = por %p65, %p66
      %p68 = scmp.ne.s32.totalorder %s54, %s55
      %p69 = scmp.eq.s32.totalorder %s21, 1
      %p70 = por %p68, %p69
      %p72 = scmp.ne.s32.totalorder %s55, %s71
      %p73 = scmp.eq.s32.totalorder %s21, 0
      %p74 = por %p72, %p73
      %s76 = sadd.s32 %s75, 1
      %p79 = scmp.eq.s32.totalorder %s15, 1
      %p80 = scmp.ne.s32.totalorder %s75, %s77
      %p81 = scmp.eq.s32.totalorder %s15, 0
      %p82 = por %p80, %p81
      %p83 = scmp.ne.s32.totalorder %s75, %s77
      %p84 = scmp.eq.s32.totalorder %s20, 1
      %p85 = por %p83, %p84
      %p86 = scmp.ne.s32.totalorder %s77, %s78
      %p87 = scmp.eq.s32.totalorder %s20, 0
      %p88 = por %p86, %p87
      %p89 = scmp.ne.s32.totalorder %s77, %s78
      %p90 = scmp.eq.s32.totalorder %s21, 1
      %p91 = por %p89, %p90
      %p93 = scmp.ne.s32.totalorder %s78, %s92
      %p94 = scmp.eq.s32.totalorder %s21, 0
      %p95 = por %p93, %p94
      %s97 = sadd.s32 %s96, 1
      %p100 = scmp.eq.s32.totalorder %s15, 1
      %p101 = scmp.ne.s32.totalorder %s96, %s98
      %p102 = scmp.eq.s32.totalorder %s15, 0
      %p103 = por %p101, %p102
      %p104 = scmp.ne.s32.totalorder %s96, %s98
      %p105 = scmp.eq.s32.totalorder %s20, 1
      %p106 = por %p104, %p105
      %p107 = scmp.ne.s32.totalorder %s98, %s99
      %p108 = scmp.eq.s32.totalorder %s20, 0
      %p109 = por %p107, %p108
      %p110 = scmp.ne.s32.totalorder %s98, %s99
      %p111 = scmp.eq.s32.totalorder %s21, 1
      %p112 = por %p110, %p111
      %p114 = scmp.ne.s32.totalorder %s99, %s113
      %p115 = scmp.eq.s32.totalorder %s21, 0
      %p116 = por %p114, %p115
      %s118 = sadd.s32 %s117, 1
      %p121 = scmp.eq.s32.totalorder %s15, 1
      %p122 = scmp.ne.s32.totalorder %s117, %s119
      %p123 = scmp.eq.s32.totalorder %s15, 0
      %p124 = por %p122, %p123
      %p125 = scmp.ne.s32.totalorder %s117, %s119
      %p126 = scmp.eq.s32.totalorder %s20, 1
      %p127 = por %p125, %p126
      %p128 = scmp.ne.s32.totalorder %s119, %s120
      %p129 = scmp.eq.s32.totalorder %s20, 0
      %p130 = por %p128, %p129
      %p131 = scmp.ne.s32.totalorder %s119, %s120
      %p132 = scmp.eq.s32.totalorder %s21, 1
      %p133 = por %p131, %p132
      %p135 = scmp.ne.s32.totalorder %s120, %s134
      %p136 = scmp.eq.s32.totalorder %s21, 0
      %p137 = por %p135, %p136
      %s139 = sadd.s32 %s138, 1
      %p142 = scmp.eq.s32.totalorder %s15, 1
      %p143 = scmp.ne.s32.totalorder %s138, %s140
      %p144 = scmp.eq.s32.totalorder %s15, 0
      %p145 = por %p143, %p144
      %p146 = scmp.ne.s32.totalorder %s138, %s140
      %p147 = scmp.eq.s32.totalorder %s20, 1
      %p148 = por %p146, %p147
      %p149 = scmp.ne.s32.totalorder %s140, %s141
      %p150 = scmp.eq.s32.totalorder %s20, 0
      %p151 = por %p149, %p150
      %p152 = scmp.ne.s32.totalorder %s140, %s141
      %p153 = scmp.eq.s32.totalorder %s21, 1
      %p154 = por %p152, %p153
      %p156 = scmp.ne.s32.totalorder %s141, %s155
      %p157 = scmp.eq.s32.totalorder %s21, 0
      %p158 = por %p156, %p157
      %s159 = ssub.s32 %s15, %s22
      %p160 = scmp.eq.s32.totalorder %s159, 0
      %s162 = sadd.s32 %s161, 1
      %s163 = scalar_select %p160, %s161, %s162
      %p166 = pneg %p160
      %p167 = scmp.eq.s32.totalorder %s15, 1
      %p168 = por %p166, %p167
      %p169 = scmp.ne.s32.totalorder %s161, %s164
      %p170 = scmp.eq.s32.totalorder %s15, 0
      %p171 = por %p169, %p170
      %p172 = scmp.ne.s32.totalorder %s161, %s164
      %p173 = scmp.eq.s32.totalorder %s20, 1
      %p174 = por %p172, %p173
      %p175 = scmp.ne.s32.totalorder %s164, %s165
      %p176 = scmp.eq.s32.totalorder %s20, 0
      %p177 = por %p175, %p176
      %p178 = scmp.ne.s32.totalorder %s164, %s165
      %p179 = scmp.eq.s32.totalorder %s21, 1
      %p180 = por %p178, %p179
      %p182 = scmp.ne.s32.totalorder %s165, %s181
      %p183 = scmp.eq.s32.totalorder %s21, 0
      %p184 = por %p182, %p183
      %p185 = scmp.le.s32.totalorder 1, %s15
      %p186 = scmp.lt.s32.totalorder %s15, 3
      %p187 = pnand %p185, %p186
      %p188 = pneg %p187
      // Predicated region
      $region9: #{tpu_custom_call.1} parent=5 // pred_check
        _
      $region10: #{tpu_custom_call.1} parent=5 // pred_check_branch
        %190 = sbr.rel (%p187) target = $region12
      $region11: #{tpu_custom_call.1} parent=5 // pred_region
        %s191 = ssub.s32 %s15, 1
        // Predicated region
        $region13: #{tpu_custom_call.1} parent=11 // pred_check
          %p192 = pneg %p88
        $region14: #{tpu_custom_call.1} parent=11 // pred_check_branch
          %194 = sbr.rel (%p192) target = $region16
        $region15: #{tpu_custom_call.1} parent=11 // pred_region
          _
        $region16: #{tpu_custom_call.1} parent=11 // pred_fallthru
          _
        // Predicated region
        $region17: #{tpu_custom_call.1} parent=11 // pred_check
          %p195 = pneg %p109
        $region18: #{tpu_custom_call.1} parent=11 // pred_check_branch
          %197 = sbr.rel (%p195) target = $region20
        $region19: #{tpu_custom_call.1} parent=11 // pred_region
          _
        $region20: #{tpu_custom_call.1} parent=11 // pred_fallthru
          _
        // Predicated region
        $region21: #{tpu_custom_call.1} parent=11 // pred_check
          %p198 = pneg %p130
        $region22: #{tpu_custom_call.1} parent=11 // pred_check_branch
          %200 = sbr.rel (%p198) target = $region24
        $region23: #{tpu_custom_call.1} parent=11 // pred_region
          _
        $region24: #{tpu_custom_call.1} parent=11 // pred_fallthru
          _
        // Predicated region
        $region25: #{tpu_custom_call.1} parent=11 // pred_check
          %p201 = pneg %p151
        $region26: #{tpu_custom_call.1} parent=11 // pred_check_branch
          %203 = sbr.rel (%p201) target = $region28
        $region27: #{tpu_custom_call.1} parent=11 // pred_region
          _
        $region28: #{tpu_custom_call.1} parent=11 // pred_fallthru
          _
      $region12: #{tpu_custom_call.1} parent=5 // pred_fallthru
        _
      %p204 = scmp.lt.s32.totalorder %s15, 2
      // Predicated region
      $region29: #{tpu_custom_call.1} parent=5 // pred_check
        %p205 = pneg %p204
      $region30: #{tpu_custom_call.1} parent=5 // pred_check_branch
        %207 = sbr.rel (%p205) target = $region32
      $region31: #{tpu_custom_call.1} parent=5 // pred_region
        // Predicated region
        $region33: #{tpu_custom_call.1} parent=31 // pred_check
          %p208 = pneg %p35
        $region34: #{tpu_custom_call.1} parent=31 // pred_check_branch
          %210 = sbr.rel (%p208) target = $region36
        $region35: #{tpu_custom_call.1} parent=31 // pred_region
          %p211 = scmp.lt.s32.totalorder %s15, 1
          %s212 = scalar_select %p211, %s15, 1
          %s213 = scalar_lea.vmem %s0, %s212
        $region36: #{tpu_custom_call.1} parent=31 // pred_fallthru
          _
        // Predicated region
        $region37: #{tpu_custom_call.1} parent=31 // pred_check
          %p214 = pneg %p61
        $region38: #{tpu_custom_call.1} parent=31 // pred_check_branch
          %216 = sbr.rel (%p214) target = $region40
        $region39: #{tpu_custom_call.1} parent=31 // pred_region
          %p217 = scmp.lt.s32.totalorder %s15, 1
          %s218 = scalar_select %p217, %s15, 1
          %s219 = scalar_lea.vmem %s1, %s218
        $region40: #{tpu_custom_call.1} parent=31 // pred_fallthru
          _
      $region32: #{tpu_custom_call.1} parent=5 // pred_fallthru
        _
      %p220 = scmp.le.s32.totalorder 1, %s15
      %p221 = scmp.lt.s32.totalorder %s15, 3
      %p222 = pnand %p220, %p221
      %p223 = pneg %p222
      // Predicated region
      $region41: #{tpu_custom_call.1} parent=5 // pred_check
        _
      $region42: #{tpu_custom_call.1} parent=5 // pred_check_branch
        %225 = sbr.rel (%p222) target = $region44
      $region43: #{tpu_custom_call.1} parent=5 // pred_region
        %s226 = ssub.s32 %s15, 1
        %p227 = scmp.lt.s32.totalorder %s20, 1
        %s228 = scalar_select %p227, %s20, 1
        %s229 = scalar_lea.vmem %s0, %s228
        %p230 = pneg %p41
        %p231 = pneg %p38
        %p232 = scmp.lt.s32.totalorder %s20, 1
        %s233 = scalar_select %p232, %s20, 1
        %s234 = scalar_lea.vmem %s1, %s233
        %p235 = pneg %p67
        %p236 = pneg %p64
        %p237 = pneg %p88
        %p238 = pneg %p85
        %p239 = pneg %p109
        %p240 = pneg %p106
        %p241 = pneg %p130
        %p242 = pneg %p127
        %p243 = pneg %p151
        %p244 = pneg %p148
        %p245 = pneg %p177
        %p246 = pneg %p174
        %s247 = sand.u32 %s164, 1
        %s248 = scalar_lea.sflag [#allocation3], %s247
        %s249 = sand.u32 %s164, 1
        %s250 = smul.addr %s249, 4
        %s251 = scalar_lea.vmem [#allocation2], %s250
        %p252 = scmp.lt.s32.totalorder %s20, 1
        %s253 = scalar_select %p252, %s20, 1
        %s254 = scalar_lea.vmem %s0, %s253
        %p255 = scmp.lt.s32.totalorder %s20, 1
        %s256 = scalar_select %p255, %s20, 1
        %s257 = scalar_lea.vmem %s1, %s256
        %v258 = vld [vmem:[%s254] sm:$0x1]
        %v259 = vld [vmem:[%s257] sm:$0x1]
        %260 = vst [vmem:[%s251] sm:$0x7] 0.0
        %v261 = vld [vmem:[%s2] sm:$0xff]
        %v262 = vld [vmem:[%s2 + $0x8] sm:$0xff]
        %v263 = vld [vmem:[%s2 + $0x10] sm:$0xff]
        %v264 = vld [vmem:[%s2 + $0x18] sm:$0xff]
        %v265 = vld [vmem:[%s3] sm:$0xff]
        %v266 = vld [vmem:[%s3 + $0x8] sm:$0xff]
        %v267 = vld [vmem:[%s3 + $0x10] sm:$0xff]
        %v268 = vld [vmem:[%s3 + $0x18] sm:$0xff]
        %v269 = vld [vmem:[%s4] sm:$0xff]
        %v270 = vld [vmem:[%s4 + $0x8] sm:$0xff]
        %v271 = vld [vmem:[%s4 + $0x10] sm:$0xff]
        %v272 = vld [vmem:[%s4 + $0x18] sm:$0xff]
        %v273 = vld [vmem:[%s5] sm:$0x7]
        %v275 = vlaneseq
        %v276 = vshrl.u32 %v275, 7
        %v277 = vsub.s32 0, %v276
        %v278 = vrot.slane %v258, %v277
        %281 = vset.pattern.permute.xlu0 0
        %282 = vperm.xlu0 %281, %v261
        %v283 = vpop.permute.xlu0 %282
        %286 = vset.pattern.permute.xlu0 0
        %287 = vperm.xlu0 %286, %v262
        %v288 = vpop.permute.xlu0 %287
        %291 = vset.pattern.permute.xlu0 0
        %292 = vperm.xlu0 %291, %v263
        %v293 = vpop.permute.xlu0 %292
        %296 = vset.pattern.permute.xlu0 0
        %297 = vperm.xlu0 %296, %v264
        %v298 = vpop.permute.xlu0 %297
        %v300 = vsub.f32 %v278, %v283
        %v301 = vsub.f32 %v278, %v288
        %v302 = vsub.f32 %v278, %v293
        %v303 = vsub.f32 %v278, %v298
        %305 = vset.pattern.permute.xlu0 0
        %306 = vperm.xlu0 %305, %v269
        %v307 = vpop.permute.xlu0 %306
        %310 = vset.pattern.permute.xlu0 0
        %311 = vperm.xlu0 %310, %v270
        %v312 = vpop.permute.xlu0 %311
        %315 = vset.pattern.permute.xlu0 0
        %316 = vperm.xlu0 %315, %v271
        %v317 = vpop.permute.xlu0 %316
        %320 = vset.pattern.permute.xlu0 0
        %321 = vperm.xlu0 %320, %v272
        %v322 = vpop.permute.xlu0 %321
        %v324 = vmul.f32 %v300, %v307
        %v325 = vmul.f32 %v301, %v312
        %v326 = vmul.f32 %v302, %v317
        %v327 = vmul.f32 %v303, %v322
        %v329 = vlaneseq
        %v330 = vshrl.u32 %v329, 7
        %v331 = vsub.s32 0, %v330
        %v332 = vrot.slane %v259, %v331
        %335 = vset.pattern.permute.xlu0 0
        %336 = vperm.xlu0 %335, %v265
        %v337 = vpop.permute.xlu0 %336
        %340 = vset.pattern.permute.xlu0 0
        %341 = vperm.xlu0 %340, %v266
        %v342 = vpop.permute.xlu0 %341
        %345 = vset.pattern.permute.xlu0 0
        %346 = vperm.xlu0 %345, %v267
        %v347 = vpop.permute.xlu0 %346
        %350 = vset.pattern.permute.xlu0 0
        %351 = vperm.xlu0 %350, %v268
        %v352 = vpop.permute.xlu0 %351
        %v354 = vsub.f32 %v332, %v337
        %v355 = vsub.f32 %v332, %v342
        %v356 = vsub.f32 %v332, %v347
        %v357 = vsub.f32 %v332, %v352
        %v358 = vmul.f32 %v354, %v307
        %v359 = vmul.f32 %v355, %v312
        %v360 = vmul.f32 %v356, %v317
        %v361 = vmul.f32 %v357, %v322
        %v362 = vmul.f32 %v324, %v324
        %v363 = vmul.f32 %v325, %v325
        %v364 = vmul.f32 %v326, %v326
        %v365 = vmul.f32 %v327, %v327
        %v366 = vmul.f32 %v358, %v358
        %v367 = vmul.f32 %v359, %v359
        %v368 = vmul.f32 %v360, %v360
        %v369 = vmul.f32 %v361, %v361
        %v370 = vadd.f32 %v362, %v366
        %v371 = vadd.f32 %v363, %v367
        %v372 = vadd.f32 %v364, %v368
        %v373 = vadd.f32 %v365, %v369
        %v374 = vrsqrt.pop %v370
        %v375 = vmul.f32 %v370, %v374
        %vm376 = vcmp.eq.f32.partialorder %v370, inf
        %v377 = vsel %vm376, %v370, %v375
        %vm378 = vcmp.eq.f32.partialorder %v370, 0.0
        %v379 = vand.u32 %v370, 2147483648
        %v380 = vsel %vm378, %v379, %v377
        %v381 = vrsqrt.pop %v371
        %v382 = vmul.f32 %v371, %v381
        %vm383 = vcmp.eq.f32.partialorder %v371, inf
        %v384 = vsel %vm383, %v371, %v382
        %vm385 = vcmp.eq.f32.partialorder %v371, 0.0
        %v386 = vand.u32 %v371, 2147483648
        %v387 = vsel %vm385, %v386, %v384
        %v388 = vrsqrt.pop %v372
        %v389 = vmul.f32 %v372, %v388
        %vm390 = vcmp.eq.f32.partialorder %v372, inf
        %v391 = vsel %vm390, %v372, %v389
        %vm392 = vcmp.eq.f32.partialorder %v372, 0.0
        %v393 = vand.u32 %v372, 2147483648
        %v394 = vsel %vm392, %v393, %v391
        %v395 = vrsqrt.pop %v373
        %v396 = vmul.f32 %v373, %v395
        %vm397 = vcmp.eq.f32.partialorder %v373, inf
        %v398 = vsel %vm397, %v373, %v396
        %vm399 = vcmp.eq.f32.partialorder %v373, 0.0
        %v400 = vand.u32 %v373, 2147483648
        %v401 = vsel %vm399, %v400, %v398
        %v402 = vand.u32 2147483647, %v380
        %vm403 = vcmp.le.f32.partialorder %v402, 0.7853982
        %vm404 = vcmp.lt.s32.totalorder %v380, 0
        %v405 = vand.u32 %v380, 2139095040
        %v406 = vshrl.u32 %v405, 23
        %v407 = vsub.s32 %v406, 127
        %v408 = vand.u32 2147483647, %v380
        %v409 = vand.u32 %v408, 8388607
        %v410 = vor.u32 %v409, 8388608
        %v411 = vsub.s32 0, %v410
        %v412 = vadd.s32 %v407, 1
        %vm413 = vcmp.gt.s32.totalorder %v412, 0
        %v414 = vsel %vm413, %v412, 0
        %v415 = vshrl.u32 %v414, 5
        %v416 = vand.u32 %v414, 31
        %v417 = vsub.s32 32, %v416
        %v418 = vshrl.u32 683565275, %v417
        %v419 = vshll.u32 683565275, %v416
        %v420 = vshrl.u32 2475754826, %v417
        %v421 = vor.u32 %v419, %v420
        %v422 = vshll.u32 2475754826, %v416
        %v423 = vshrl.u32 2131351028, %v417
        %v424 = vor.u32 %v422, %v423
        %v425 = vshll.u32 2131351028, %v416
        %v426 = vshrl.u32 2102212464, %v417
        %v427 = vor.u32 %v425, %v426
        %v428 = vshll.u32 2102212464, %v416
        %v429 = vshrl.u32 920167782, %v417
        %v430 = vor.u32 %v428, %v429
        %v431 = vshll.u32 920167782, %v416
        %v432 = vshrl.u32 1326507024, %v417
        %v433 = vor.u32 %v431, %v432
        %vm434 = vcmp.lt.s32.totalorder %v415, 1
        %vm435 = vcmp.lt.s32.totalorder %v415, 2
        %vm436 = vcmp.lt.s32.totalorder %v415, 3
        %vm437 = vcmp.lt.s32.totalorder %v415, 4
        %v438 = vsel %vm434, %v418, %v421
        %v439 = vsel %vm437, %v427, 2102212464
        %v440 = vsel %vm436, %v424, %v439
        %v441 = vsel %vm435, %v438, %v440
        %v442 = vsel %vm434, %v421, %v424
        %v443 = vsel %vm437, %v430, 920167782
        %v444 = vsel %vm436, %v427, %v443
        %v445 = vsel %vm435, %v442, %v444
        %v446 = vsel %vm434, %v424, %v427
        %v447 = vsel %vm437, %v433, 1326507024
        %v448 = vsel %vm436, %v430, %v447
        %v449 = vsel %vm435, %v446, %v448
        %v450 = vshll.u32 %v410, 8
        %v451 = vmul.u32.u64.compose %v450, %v449
        %v452 = vextract.low.u32 %v451
        %v453 = vextract.high.u32 %v451
        %v454 = vmul.u32.u64.compose %v450, %v445
        %v455 = vextract.low.u32 %v454
        %v456 = vextract.high.u32 %v454
        %v457 = vmul.u32 %v450, %v441
        %v458 = vadd.s32 %v453, %v455
        %vm459 = vc.u32 %v453, %v455
        %v460 = vadd.s32 %v456, 1
        %v461 = vsel %vm459, %v460, %v456
        %v462 = vadd.s32 %v457, %v461
        %v463 = vadd.s32 %v462, 536870912
        %v464 = vshrl.u32 %v463, 30
        %v465 = vshll.u32 %v464, 30
        %v466 = vsub.s32 %v462, %v465
        %vm467 = vcmp.lt.s32.totalorder %v466, 0
        %v468 = vsub.s32 0, %v466
        %v469 = vsel %vm467, %v468, %v466
        %v470 = vclz %v469
        %v471 = vsub.s32 %v470, 2
        %vm472 = vcmp.gt.s32.totalorder 0, %v471
        %v473 = vsel %vm472, 0, %v471
        %v474 = vsub.s32 32, %v473
        %v475 = vshll.u32 %v466, %v473
        %v476 = vshrl.u32 %v458, %v474
        %v477 = vor.u32 %v475, %v476
        %v478 = vsub.s32 4294967266, %v473
        %v479 = vadd.s32 %v478, 127
        %v480 = vshll.u32 %v479, 23
        %v481 = vor.u32 4788187, %v480
        %v482 = vand.u32 2147483647, %v481
        %v484 = vcvt.s32.f32 %v477
        %v485 = vmul.f32 %v484, %v482
        %v486 = vxor.u32 %v485, 2147483648
        %v487 = vsel %vm404, %v486, %v485
        %v488 = vsub.s32 4, %v464
        %v489 = vsel %vm404, %v488, %v464
        %v490 = vsel %vm403, %v380, %v487
        %v491 = vsel %vm403, 0, %v489
        %v492 = vcosq.f32.pop %v490
        %v493 = vsinq.f32.pop %v490
        %vm494 = vweird.f32 %v380
        %v495 = vadd.s32 %v491, 3
        %v496 = vand.u32 %v495, 3
        %vm497 = vcmp.lt.s32.totalorder %v496, 2
        %vm498 = vcmp.eq.s32.totalorder %v496, 0
        %v499 = vxor.u32 %v493, 2147483648
        %v500 = vsel %vm498, %v492, %v499
        %vm501 = vcmp.eq.s32.totalorder %v496, 2
        %v502 = vxor.u32 %v492, 2147483648
        %v503 = vsel %vm501, %v502, %v493
        %v504 = vsel %vm497, %v500, %v503
        %v505 = vsel %vm494, nan, %v504
        %v506 = vand.u32 2147483647, %v387
        %vm507 = vcmp.le.f32.partialorder %v506, 0.7853982
        %vm508 = vcmp.lt.s32.totalorder %v387, 0
        %v509 = vand.u32 %v387, 2139095040
        %v510 = vshrl.u32 %v509, 23
        %v511 = vsub.s32 %v510, 127
        %v512 = vand.u32 2147483647, %v387
        %v513 = vand.u32 %v512, 8388607
        %v514 = vor.u32 %v513, 8388608
        %v515 = vsub.s32 0, %v514
        %v516 = vadd.s32 %v511, 1
        %vm517 = vcmp.gt.s32.totalorder %v516, 0
        %v518 = vsel %vm517, %v516, 0
        %v519 = vshrl.u32 %v518, 5
        %v520 = vand.u32 %v518, 31
        %v521 = vsub.s32 32, %v520
        %v522 = vshrl.u32 683565275, %v521
        %v523 = vshll.u32 683565275, %v520
        %v524 = vshrl.u32 2475754826, %v521
        %v525 = vor.u32 %v523, %v524
        %v526 = vshll.u32 2475754826, %v520
        %v527 = vshrl.u32 2131351028, %v521
        %v528 = vor.u32 %v526, %v527
        %v529 = vshll.u32 2131351028, %v520
        %v530 = vshrl.u32 2102212464, %v521
        %v531 = vor.u32 %v529, %v530
        %v532 = vshll.u32 2102212464, %v520
        %v533 = vshrl.u32 920167782, %v521
        %v534 = vor.u32 %v532, %v533
        %v535 = vshll.u32 920167782, %v520
        %v536 = vshrl.u32 1326507024, %v521
        %v537 = vor.u32 %v535, %v536
        %vm538 = vcmp.lt.s32.totalorder %v519, 1
        %vm539 = vcmp.lt.s32.totalorder %v519, 2
        %vm540 = vcmp.lt.s32.totalorder %v519, 3
        %vm541 = vcmp.lt.s32.totalorder %v519, 4
        %v542 = vsel %vm538, %v522, %v525
        %v543 = vsel %vm541, %v531, 2102212464
        %v544 = vsel %vm540, %v528, %v543
        %v545 = vsel %vm539, %v542, %v544
        %v546 = vsel %vm538, %v525, %v528
        %v547 = vsel %vm541, %v534, 920167782
        %v548 = vsel %vm540, %v531, %v547
        %v549 = vsel %vm539, %v546, %v548
        %v550 = vsel %vm538, %v528, %v531
        %v551 = vsel %vm541, %v537, 1326507024
        %v552 = vsel %vm540, %v534, %v551
        %v553 = vsel %vm539, %v550, %v552
        %v554 = vshll.u32 %v514, 8
        %v555 = vmul.u32.u64.compose %v554, %v553
        %v556 = vextract.low.u32 %v555
        %v557 = vextract.high.u32 %v555
        %v558 = vmul.u32.u64.compose %v554, %v549
        %v559 = vextract.low.u32 %v558
        %v560 = vextract.high.u32 %v558
        %v561 = vmul.u32 %v554, %v545
        %v562 = vadd.s32 %v557, %v559
        %vm563 = vc.u32 %v557, %v559
        %v564 = vadd.s32 %v560, 1
        %v565 = vsel %vm563, %v564, %v560
        %v566 = vadd.s32 %v561, %v565
        %v567 = vadd.s32 %v566, 536870912
        %v568 = vshrl.u32 %v567, 30
        %v569 = vshll.u32 %v568, 30
        %v570 = vsub.s32 %v566, %v569
        %vm571 = vcmp.lt.s32.totalorder %v570, 0
        %v572 = vsub.s32 0, %v570
        %v573 = vsel %vm571, %v572, %v570
        %v574 = vclz %v573
        %v575 = vsub.s32 %v574, 2
        %vm576 = vcmp.gt.s32.totalorder 0, %v575
        %v577 = vsel %vm576, 0, %v575
        %v578 = vsub.s32 32, %v577
        %v579 = vshll.u32 %v570, %v577
        %v580 = vshrl.u32 %v562, %v578
        %v581 = vor.u32 %v579, %v580
        %v582 = vsub.s32 4294967266, %v577
        %v583 = vadd.s32 %v582, 127
        %v584 = vshll.u32 %v583, 23
        %v585 = vor.u32 4788187, %v584
        %v586 = vand.u32 2147483647, %v585
        %v588 = vcvt.s32.f32 %v581
        %v589 = vmul.f32 %v588, %v586
        %v590 = vxor.u32 %v589, 2147483648
        %v591 = vsel %vm508, %v590, %v589
        %v592 = vsub.s32 4, %v568
        %v593 = vsel %vm508, %v592, %v568
        %v594 = vsel %vm507, %v387, %v591
        %v595 = vsel %vm507, 0, %v593
        %v596 = vcosq.f32.pop %v594
        %v597 = vsinq.f32.pop %v594
        %vm598 = vweird.f32 %v387
        %v599 = vadd.s32 %v595, 3
        %v600 = vand.u32 %v599, 3
        %vm601 = vcmp.lt.s32.totalorder %v600, 2
        %vm602 = vcmp.eq.s32.totalorder %v600, 0
        %v603 = vxor.u32 %v597, 2147483648
        %v604 = vsel %vm602, %v596, %v603
        %vm605 = vcmp.eq.s32.totalorder %v600, 2
        %v606 = vxor.u32 %v596, 2147483648
        %v607 = vsel %vm605, %v606, %v597
        %v608 = vsel %vm601, %v604, %v607
        %v609 = vsel %vm598, nan, %v608
        %v610 = vand.u32 2147483647, %v394
        %vm611 = vcmp.le.f32.partialorder %v610, 0.7853982
        %vm612 = vcmp.lt.s32.totalorder %v394, 0
        %v613 = vand.u32 %v394, 2139095040
        %v614 = vshrl.u32 %v613, 23
        %v615 = vsub.s32 %v614, 127
        %v616 = vand.u32 2147483647, %v394
        %v617 = vand.u32 %v616, 8388607
        %v618 = vor.u32 %v617, 8388608
        %v619 = vsub.s32 0, %v618
        %v620 = vadd.s32 %v615, 1
        %vm621 = vcmp.gt.s32.totalorder %v620, 0
        %v622 = vsel %vm621, %v620, 0
        %v623 = vshrl.u32 %v622, 5
        %v624 = vand.u32 %v622, 31
        %v625 = vsub.s32 32, %v624
        %v626 = vshrl.u32 683565275, %v625
        %v627 = vshll.u32 683565275, %v624
        %v628 = vshrl.u32 2475754826, %v625
        %v629 = vor.u32 %v627, %v628
        %v630 = vshll.u32 2475754826, %v624
        %v631 = vshrl.u32 2131351028, %v625
        %v632 = vor.u32 %v630, %v631
        %v633 = vshll.u32 2131351028, %v624
        %v634 = vshrl.u32 2102212464, %v625
        %v635 = vor.u32 %v633, %v634
        %v636 = vshll.u32 2102212464, %v624
        %v637 = vshrl.u32 920167782, %v625
        %v638 = vor.u32 %v636, %v637
        %v639 = vshll.u32 920167782, %v624
        %v640 = vshrl.u32 1326507024, %v625
        %v641 = vor.u32 %v639, %v640
        %vm642 = vcmp.lt.s32.totalorder %v623, 1
        %vm643 = vcmp.lt.s32.totalorder %v623, 2
        %vm644 = vcmp.lt.s32.totalorder %v623, 3
        %vm645 = vcmp.lt.s32.totalorder %v623, 4
        %v646 = vsel %vm642, %v626, %v629
        %v647 = vsel %vm645, %v635, 2102212464
        %v648 = vsel %vm644, %v632, %v647
        %v649 = vsel %vm643, %v646, %v648
        %v650 = vsel %vm642, %v629, %v632
        %v651 = vsel %vm645, %v638, 920167782
        %v652 = vsel %vm644, %v635, %v651
        %v653 = vsel %vm643, %v650, %v652
        %v654 = vsel %vm642, %v632, %v635
        %v655 = vsel %vm645, %v641, 1326507024
        %v656 = vsel %vm644, %v638, %v655
        %v657 = vsel %vm643, %v654, %v656
        %v658 = vshll.u32 %v618, 8
        %v659 = vmul.u32.u64.compose %v658, %v657
        %v660 = vextract.low.u32 %v659
        %v661 = vextract.high.u32 %v659
        %v662 = vmul.u32.u64.compose %v658, %v653
        %v663 = vextract.low.u32 %v662
        %v664 = vextract.high.u32 %v662
        %v665 = vmul.u32 %v658, %v649
        %v666 = vadd.s32 %v661, %v663
        %vm667 = vc.u32 %v661, %v663
        %v668 = vadd.s32 %v664, 1
        %v669 = vsel %vm667, %v668, %v664
        %v670 = vadd.s32 %v665, %v669
        %v671 = vadd.s32 %v670, 536870912
        %v672 = vshrl.u32 %v671, 30
        %v673 = vshll.u32 %v672, 30
        %v674 = vsub.s32 %v670, %v673
        %vm675 = vcmp.lt.s32.totalorder %v674, 0
        %v676 = vsub.s32 0, %v674
        %v677 = vsel %vm675, %v676, %v674
        %v678 = vclz %v677
        %v679 = vsub.s32 %v678, 2
        %vm680 = vcmp.gt.s32.totalorder 0, %v679
        %v681 = vsel %vm680, 0, %v679
        %v682 = vsub.s32 32, %v681
        %v683 = vshll.u32 %v674, %v681
        %v684 = vshrl.u32 %v666, %v682
        %v685 = vor.u32 %v683, %v684
        %v686 = vsub.s32 4294967266, %v681
        %v687 = vadd.s32 %v686, 127
        %v688 = vshll.u32 %v687, 23
        %v689 = vor.u32 4788187, %v688
        %v690 = vand.u32 2147483647, %v689
        %v692 = vcvt.s32.f32 %v685
        %v693 = vmul.f32 %v692, %v690
        %v694 = vxor.u32 %v693, 2147483648
        %v695 = vsel %vm612, %v694, %v693
        %v696 = vsub.s32 4, %v672
        %v697 = vsel %vm612, %v696, %v672
        %v698 = vsel %vm611, %v394, %v695
        %v699 = vsel %vm611, 0, %v697
        %v700 = vcosq.f32.pop %v698
        %v701 = vsinq.f32.pop %v698
        %vm702 = vweird.f32 %v394
        %v703 = vadd.s32 %v699, 3
        %v704 = vand.u32 %v703, 3
        %vm705 = vcmp.lt.s32.totalorder %v704, 2
        %vm706 = vcmp.eq.s32.totalorder %v704, 0
        %v707 = vxor.u32 %v701, 2147483648
        %v708 = vsel %vm706, %v700, %v707
        %vm709 = vcmp.eq.s32.totalorder %v704, 2
        %v710 = vxor.u32 %v700, 2147483648
        %v711 = vsel %vm709, %v710, %v701
        %v712 = vsel %vm705, %v708, %v711
        %v713 = vsel %vm702, nan, %v712
        %v714 = vand.u32 2147483647, %v401
        %vm715 = vcmp.le.f32.partialorder %v714, 0.7853982
        %vm716 = vcmp.lt.s32.totalorder %v401, 0
        %v717 = vand.u32 %v401, 2139095040
        %v718 = vshrl.u32 %v717, 23
        %v719 = vsub.s32 %v718, 127
        %v720 = vand.u32 2147483647, %v401
        %v721 = vand.u32 %v720, 8388607
        %v722 = vor.u32 %v721, 8388608
        %v723 = vsub.s32 0, %v722
        %v724 = vadd.s32 %v719, 1
        %vm725 = vcmp.gt.s32.totalorder %v724, 0
        %v726 = vsel %vm725, %v724, 0
        %v727 = vshrl.u32 %v726, 5
        %v728 = vand.u32 %v726, 31
        %v729 = vsub.s32 32, %v728
        %v730 = vshrl.u32 683565275, %v729
        %v731 = vshll.u32 683565275, %v728
        %v732 = vshrl.u32 2475754826, %v729
        %v733 = vor.u32 %v731, %v732
        %v734 = vshll.u32 2475754826, %v728
        %v735 = vshrl.u32 2131351028, %v729
        %v736 = vor.u32 %v734, %v735
        %v737 = vshll.u32 2131351028, %v728
        %v738 = vshrl.u32 2102212464, %v729
        %v739 = vor.u32 %v737, %v738
        %v740 = vshll.u32 2102212464, %v728
        %v741 = vshrl.u32 920167782, %v729
        %v742 = vor.u32 %v740, %v741
        %v743 = vshll.u32 920167782, %v728
        %v744 = vshrl.u32 1326507024, %v729
        %v745 = vor.u32 %v743, %v744
        %vm746 = vcmp.lt.s32.totalorder %v727, 1
        %vm747 = vcmp.lt.s32.totalorder %v727, 2
        %vm748 = vcmp.lt.s32.totalorder %v727, 3
        %vm749 = vcmp.lt.s32.totalorder %v727, 4
        %v750 = vsel %vm746, %v730, %v733
        %v751 = vsel %vm749, %v739, 2102212464
        %v752 = vsel %vm748, %v736, %v751
        %v753 = vsel %vm747, %v750, %v752
        %v754 = vsel %vm746, %v733, %v736
        %v755 = vsel %vm749, %v742, 920167782
        %v756 = vsel %vm748, %v739, %v755
        %v757 = vsel %vm747, %v754, %v756
        %v758 = vsel %vm746, %v736, %v739
        %v759 = vsel %vm749, %v745, 1326507024
        %v760 = vsel %vm748, %v742, %v759
        %v761 = vsel %vm747, %v758, %v760
        %v762 = vshll.u32 %v722, 8
        %v763 = vmul.u32.u64.compose %v762, %v761
        %v764 = vextract.low.u32 %v763
        %v765 = vextract.high.u32 %v763
        %v766 = vmul.u32.u64.compose %v762, %v757
        %v767 = vextract.low.u32 %v766
        %v768 = vextract.high.u32 %v766
        %v769 = vmul.u32 %v762, %v753
        %v770 = vadd.s32 %v765, %v767
        %vm771 = vc.u32 %v765, %v767
        %v772 = vadd.s32 %v768, 1
        %v773 = vsel %vm771, %v772, %v768
        %v774 = vadd.s32 %v769, %v773
        %v775 = vadd.s32 %v774, 536870912
        %v776 = vshrl.u32 %v775, 30
        %v777 = vshll.u32 %v776, 30
        %v778 = vsub.s32 %v774, %v777
        %vm779 = vcmp.lt.s32.totalorder %v778, 0
        %v780 = vsub.s32 0, %v778
        %v781 = vsel %vm779, %v780, %v778
        %v782 = vclz %v781
        %v783 = vsub.s32 %v782, 2
        %vm784 = vcmp.gt.s32.totalorder 0, %v783
        %v785 = vsel %vm784, 0, %v783
        %v786 = vsub.s32 32, %v785
        %v787 = vshll.u32 %v778, %v785
        %v788 = vshrl.u32 %v770, %v786
        %v789 = vor.u32 %v787, %v788
        %v790 = vsub.s32 4294967266, %v785
        %v791 = vadd.s32 %v790, 127
        %v792 = vshll.u32 %v791, 23
        %v793 = vor.u32 4788187, %v792
        %v794 = vand.u32 2147483647, %v793
        %v796 = vcvt.s32.f32 %v789
        %v797 = vmul.f32 %v796, %v794
        %v798 = vxor.u32 %v797, 2147483648
        %v799 = vsel %vm716, %v798, %v797
        %v800 = vsub.s32 4, %v776
        %v801 = vsel %vm716, %v800, %v776
        %v802 = vsel %vm715, %v401, %v799
        %v803 = vsel %vm715, 0, %v801
        %v804 = vcosq.f32.pop %v802
        %v805 = vsinq.f32.pop %v802
        %vm806 = vweird.f32 %v401
        %v807 = vadd.s32 %v803, 3
        %v808 = vand.u32 %v807, 3
        %vm809 = vcmp.lt.s32.totalorder %v808, 2
        %vm810 = vcmp.eq.s32.totalorder %v808, 0
        %v811 = vxor.u32 %v805, 2147483648
        %v812 = vsel %vm810, %v804, %v811
        %vm813 = vcmp.eq.s32.totalorder %v808, 2
        %v814 = vxor.u32 %v804, 2147483648
        %v815 = vsel %vm813, %v814, %v805
        %v816 = vsel %vm809, %v812, %v815
        %v817 = vsel %vm806, nan, %v816
        %v818 = vand.u32 2147483647, %v380
        %vm819 = vcmp.le.f32.partialorder %v818, 0.7853982
        %vm820 = vcmp.lt.s32.totalorder %v380, 0
        %v821 = vand.u32 %v380, 2139095040
        %v822 = vshrl.u32 %v821, 23
        %v823 = vsub.s32 %v822, 127
        %v824 = vand.u32 2147483647, %v380
        %v825 = vand.u32 %v824, 8388607
        %v826 = vor.u32 %v825, 8388608
        %v827 = vsub.s32 0, %v826
        %v828 = vadd.s32 %v823, 1
        %vm829 = vcmp.gt.s32.totalorder %v828, 0
        %v830 = vsel %vm829, %v828, 0
        %v831 = vshrl.u32 %v830, 5
        %v832 = vand.u32 %v830, 31
        %v833 = vsub.s32 32, %v832
        %v834 = vshrl.u32 683565275, %v833
        %v835 = vshll.u32 683565275, %v832
        %v836 = vshrl.u32 2475754826, %v833
        %v837 = vor.u32 %v835, %v836
        %v838 = vshll.u32 2475754826, %v832
        %v839 = vshrl.u32 2131351028, %v833
        %v840 = vor.u32 %v838, %v839
        %v841 = vshll.u32 2131351028, %v832
        %v842 = vshrl.u32 2102212464, %v833
        %v843 = vor.u32 %v841, %v842
        %v844 = vshll.u32 2102212464, %v832
        %v845 = vshrl.u32 920167782, %v833
        %v846 = vor.u32 %v844, %v845
        %v847 = vshll.u32 920167782, %v832
        %v848 = vshrl.u32 1326507024, %v833
        %v849 = vor.u32 %v847, %v848
        %vm850 = vcmp.lt.s32.totalorder %v831, 1
        %vm851 = vcmp.lt.s32.totalorder %v831, 2
        %vm852 = vcmp.lt.s32.totalorder %v831, 3
        %vm853 = vcmp.lt.s32.totalorder %v831, 4
        %v854 = vsel %vm850, %v834, %v837
        %v855 = vsel %vm853, %v843, 2102212464
        %v856 = vsel %vm852, %v840, %v855
        %v857 = vsel %vm851, %v854, %v856
        %v858 = vsel %vm850, %v837, %v840
        %v859 = vsel %vm853, %v846, 920167782
        %v860 = vsel %vm852, %v843, %v859
        %v861 = vsel %vm851, %v858, %v860
        %v862 = vsel %vm850, %v840, %v843
        %v863 = vsel %vm853, %v849, 1326507024
        %v864 = vsel %vm852, %v846, %v863
        %v865 = vsel %vm851, %v862, %v864
        %v866 = vshll.u32 %v826, 8
        %v867 = vmul.u32.u64.compose %v866, %v865
        %v868 = vextract.low.u32 %v867
        %v869 = vextract.high.u32 %v867
        %v870 = vmul.u32.u64.compose %v866, %v861
        %v871 = vextract.low.u32 %v870
        %v872 = vextract.high.u32 %v870
        %v873 = vmul.u32 %v866, %v857
        %v874 = vadd.s32 %v869, %v871
        %vm875 = vc.u32 %v869, %v871
        %v876 = vadd.s32 %v872, 1
        %v877 = vsel %vm875, %v876, %v872
        %v878 = vadd.s32 %v873, %v877
        %v879 = vadd.s32 %v878, 536870912
        %v880 = vshrl.u32 %v879, 30
        %v881 = vshll.u32 %v880, 30
        %v882 = vsub.s32 %v878, %v881
        %vm883 = vcmp.lt.s32.totalorder %v882, 0
        %v884 = vsub.s32 0, %v882
        %v885 = vsel %vm883, %v884, %v882
        %v886 = vclz %v885
        %v887 = vsub.s32 %v886, 2
        %vm888 = vcmp.gt.s32.totalorder 0, %v887
        %v889 = vsel %vm888, 0, %v887
        %v890 = vsub.s32 32, %v889
        %v891 = vshll.u32 %v882, %v889
        %v892 = vshrl.u32 %v874, %v890
        %v893 = vor.u32 %v891, %v892
        %v894 = vsub.s32 4294967266, %v889
        %v895 = vadd.s32 %v894, 127
        %v896 = vshll.u32 %v895, 23
        %v897 = vor.u32 4788187, %v896
        %v898 = vand.u32 2147483647, %v897
        %v900 = vcvt.s32.f32 %v893
        %v901 = vmul.f32 %v900, %v898
        %v902 = vxor.u32 %v901, 2147483648
        %v903 = vsel %vm820, %v902, %v901
        %v904 = vsub.s32 4, %v880
        %v905 = vsel %vm820, %v904, %v880
        %v906 = vsel %vm819, %v380, %v903
        %v907 = vsel %vm819, 0, %v905
        %v908 = vcosq.f32.pop %v906
        %v909 = vsinq.f32.pop %v906
        %vm910 = vweird.f32 %v380
        %v911 = vand.u32 %v907, 3
        %vm912 = vcmp.lt.s32.totalorder %v911, 2
        %vm913 = vcmp.eq.s32.totalorder %v911, 0
        %v914 = vxor.u32 %v909, 2147483648
        %v915 = vsel %vm913, %v908, %v914
        %vm916 = vcmp.eq.s32.totalorder %v911, 2
        %v917 = vxor.u32 %v908, 2147483648
        %v918 = vsel %vm916, %v917, %v909
        %v919 = vsel %vm912, %v915, %v918
        %v920 = vsel %vm910, nan, %v919
        %v921 = vand.u32 2147483647, %v387
        %vm922 = vcmp.le.f32.partialorder %v921, 0.7853982
        %vm923 = vcmp.lt.s32.totalorder %v387, 0
        %v924 = vand.u32 %v387, 2139095040
        %v925 = vshrl.u32 %v924, 23
        %v926 = vsub.s32 %v925, 127
        %v927 = vand.u32 2147483647, %v387
        %v928 = vand.u32 %v927, 8388607
        %v929 = vor.u32 %v928, 8388608
        %v930 = vsub.s32 0, %v929
        %v931 = vadd.s32 %v926, 1
        %vm932 = vcmp.gt.s32.totalorder %v931, 0
        %v933 = vsel %vm932, %v931, 0
        %v934 = vshrl.u32 %v933, 5
        %v935 = vand.u32 %v933, 31
        %v936 = vsub.s32 32, %v935
        %v937 = vshrl.u32 683565275, %v936
        %v938 = vshll.u32 683565275, %v935
        %v939 = vshrl.u32 2475754826, %v936
        %v940 = vor.u32 %v938, %v939
        %v941 = vshll.u32 2475754826, %v935
        %v942 = vshrl.u32 2131351028, %v936
        %v943 = vor.u32 %v941, %v942
        %v944 = vshll.u32 2131351028, %v935
        %v945 = vshrl.u32 2102212464, %v936
        %v946 = vor.u32 %v944, %v945
        %v947 = vshll.u32 2102212464, %v935
        %v948 = vshrl.u32 920167782, %v936
        %v949 = vor.u32 %v947, %v948
        %v950 = vshll.u32 920167782, %v935
        %v951 = vshrl.u32 1326507024, %v936
        %v952 = vor.u32 %v950, %v951
        %vm953 = vcmp.lt.s32.totalorder %v934, 1
        %vm954 = vcmp.lt.s32.totalorder %v934, 2
        %vm955 = vcmp.lt.s32.totalorder %v934, 3
        %vm956 = vcmp.lt.s32.totalorder %v934, 4
        %v957 = vsel %vm953, %v937, %v940
        %v958 = vsel %vm956, %v946, 2102212464
        %v959 = vsel %vm955, %v943, %v958
        %v960 = vsel %vm954, %v957, %v959
        %v961 = vsel %vm953, %v940, %v943
        %v962 = vsel %vm956, %v949, 920167782
        %v963 = vsel %vm955, %v946, %v962
        %v964 = vsel %vm954, %v961, %v963
        %v965 = vsel %vm953, %v943, %v946
        %v966 = vsel %vm956, %v952, 1326507024
        %v967 = vsel %vm955, %v949, %v966
        %v968 = vsel %vm954, %v965, %v967
        %v969 = vshll.u32 %v929, 8
        %v970 = vmul.u32.u64.compose %v969, %v968
        %v971 = vextract.low.u32 %v970
        %v972 = vextract.high.u32 %v970
        %v973 = vmul.u32.u64.compose %v969, %v964
        %v974 = vextract.low.u32 %v973
        %v975 = vextract.high.u32 %v973
        %v976 = vmul.u32 %v969, %v960
        %v977 = vadd.s32 %v972, %v974
        %vm978 = vc.u32 %v972, %v974
        %v979 = vadd.s32 %v975, 1
        %v980 = vsel %vm978, %v979, %v975
        %v981 = vadd.s32 %v976, %v980
        %v982 = vadd.s32 %v981, 536870912
        %v983 = vshrl.u32 %v982, 30
        %v984 = vshll.u32 %v983, 30
        %v985 = vsub.s32 %v981, %v984
        %vm986 = vcmp.lt.s32.totalorder %v985, 0
        %v987 = vsub.s32 0, %v985
        %v988 = vsel %vm986, %v987, %v985
        %v989 = vclz %v988
        %v990 = vsub.s32 %v989, 2
        %vm991 = vcmp.gt.s32.totalorder 0, %v990
        %v992 = vsel %vm991, 0, %v990
        %v993 = vsub.s32 32, %v992
        %v994 = vshll.u32 %v985, %v992
        %v995 = vshrl.u32 %v977, %v993
        %v996 = vor.u32 %v994, %v995
        %v997 = vsub.s32 4294967266, %v992
        %v998 = vadd.s32 %v997, 127
        %v999 = vshll.u32 %v998, 23
        %v1000 = vor.u32 4788187, %v999
        %v1001 = vand.u32 2147483647, %v1000
        %v1003 = vcvt.s32.f32 %v996
        %v1004 = vmul.f32 %v1003, %v1001
        %v1005 = vxor.u32 %v1004, 2147483648
        %v1006 = vsel %vm923, %v1005, %v1004
        %v1007 = vsub.s32 4, %v983
        %v1008 = vsel %vm923, %v1007, %v983
        %v1009 = vsel %vm922, %v387, %v1006
        %v1010 = vsel %vm922, 0, %v1008
        %v1011 = vcosq.f32.pop %v1009
        %v1012 = vsinq.f32.pop %v1009
        %vm1013 = vweird.f32 %v387
        %v1014 = vand.u32 %v1010, 3
        %vm1015 = vcmp.lt.s32.totalorder %v1014, 2
        %vm1016 = vcmp.eq.s32.totalorder %v1014, 0
        %v1017 = vxor.u32 %v1012, 2147483648
        %v1018 = vsel %vm1016, %v1011, %v1017
        %vm1019 = vcmp.eq.s32.totalorder %v1014, 2
        %v1020 = vxor.u32 %v1011, 2147483648
        %v1021 = vsel %vm1019, %v1020, %v1012
        %v1022 = vsel %vm1015, %v1018, %v1021
        %v1023 = vsel %vm1013, nan, %v1022
        %v1024 = vand.u32 2147483647, %v394
        %vm1025 = vcmp.le.f32.partialorder %v1024, 0.7853982
        %vm1026 = vcmp.lt.s32.totalorder %v394, 0
        %v1027 = vand.u32 %v394, 2139095040
        %v1028 = vshrl.u32 %v1027, 23
        %v1029 = vsub.s32 %v1028, 127
        %v1030 = vand.u32 2147483647, %v394
        %v1031 = vand.u32 %v1030, 8388607
        %v1032 = vor.u32 %v1031, 8388608
        %v1033 = vsub.s32 0, %v1032
        %v1034 = vadd.s32 %v1029, 1
        %vm1035 = vcmp.gt.s32.totalorder %v1034, 0
        %v1036 = vsel %vm1035, %v1034, 0
        %v1037 = vshrl.u32 %v1036, 5
        %v1038 = vand.u32 %v1036, 31
        %v1039 = vsub.s32 32, %v1038
        %v1040 = vshrl.u32 683565275, %v1039
        %v1041 = vshll.u32 683565275, %v1038
        %v1042 = vshrl.u32 2475754826, %v1039
        %v1043 = vor.u32 %v1041, %v1042
        %v1044 = vshll.u32 2475754826, %v1038
        %v1045 = vshrl.u32 2131351028, %v1039
        %v1046 = vor.u32 %v1044, %v1045
        %v1047 = vshll.u32 2131351028, %v1038
        %v1048 = vshrl.u32 2102212464, %v1039
        %v1049 = vor.u32 %v1047, %v1048
        %v1050 = vshll.u32 2102212464, %v1038
        %v1051 = vshrl.u32 920167782, %v1039
        %v1052 = vor.u32 %v1050, %v1051
        %v1053 = vshll.u32 920167782, %v1038
        %v1054 = vshrl.u32 1326507024, %v1039
        %v1055 = vor.u32 %v1053, %v1054
        %vm1056 = vcmp.lt.s32.totalorder %v1037, 1
        %vm1057 = vcmp.lt.s32.totalorder %v1037, 2
        %vm1058 = vcmp.lt.s32.totalorder %v1037, 3
        %vm1059 = vcmp.lt.s32.totalorder %v1037, 4
        %v1060 = vsel %vm1056, %v1040, %v1043
        %v1061 = vsel %vm1059, %v1049, 2102212464
        %v1062 = vsel %vm1058, %v1046, %v1061
        %v1063 = vsel %vm1057, %v1060, %v1062
        %v1064 = vsel %vm1056, %v1043, %v1046
        %v1065 = vsel %vm1059, %v1052, 920167782
        %v1066 = vsel %vm1058, %v1049, %v1065
        %v1067 = vsel %vm1057, %v1064, %v1066
        %v1068 = vsel %vm1056, %v1046, %v1049
        %v1069 = vsel %vm1059, %v1055, 1326507024
        %v1070 = vsel %vm1058, %v1052, %v1069
        %v1071 = vsel %vm1057, %v1068, %v1070
        %v1072 = vshll.u32 %v1032, 8
        %v1073 = vmul.u32.u64.compose %v1072, %v1071
        %v1074 = vextract.low.u32 %v1073
        %v1075 = vextract.high.u32 %v1073
        %v1076 = vmul.u32.u64.compose %v1072, %v1067
        %v1077 = vextract.low.u32 %v1076
        %v1078 = vextract.high.u32 %v1076
        %v1079 = vmul.u32 %v1072, %v1063
        %v1080 = vadd.s32 %v1075, %v1077
        %vm1081 = vc.u32 %v1075, %v1077
        %v1082 = vadd.s32 %v1078, 1
        %v1083 = vsel %vm1081, %v1082, %v1078
        %v1084 = vadd.s32 %v1079, %v1083
        %v1085 = vadd.s32 %v1084, 536870912
        %v1086 = vshrl.u32 %v1085, 30
        %v1087 = vshll.u32 %v1086, 30
        %v1088 = vsub.s32 %v1084, %v1087
        %vm1089 = vcmp.lt.s32.totalorder %v1088, 0
        %v1090 = vsub.s32 0, %v1088
        %v1091 = vsel %vm1089, %v1090, %v1088
        %v1092 = vclz %v1091
        %v1093 = vsub.s32 %v1092, 2
        %vm1094 = vcmp.gt.s32.totalorder 0, %v1093
        %v1095 = vsel %vm1094, 0, %v1093
        %v1096 = vsub.s32 32, %v1095
        %v1097 = vshll.u32 %v1088, %v1095
        %v1098 = vshrl.u32 %v1080, %v1096
        %v1099 = vor.u32 %v1097, %v1098
        %v1100 = vsub.s32 4294967266, %v1095
        %v1101 = vadd.s32 %v1100, 127
        %v1102 = vshll.u32 %v1101, 23
        %v1103 = vor.u32 4788187, %v1102
        %v1104 = vand.u32 2147483647, %v1103
        %v1106 = vcvt.s32.f32 %v1099
        %v1107 = vmul.f32 %v1106, %v1104
        %v1108 = vxor.u32 %v1107, 2147483648
        %v1109 = vsel %vm1026, %v1108, %v1107
        %v1110 = vsub.s32 4, %v1086
        %v1111 = vsel %vm1026, %v1110, %v1086
        %v1112 = vsel %vm1025, %v394, %v1109
        %v1113 = vsel %vm1025, 0, %v1111
        %v1114 = vcosq.f32.pop %v1112
        %v1115 = vsinq.f32.pop %v1112
        %vm1116 = vweird.f32 %v394
        %v1117 = vand.u32 %v1113, 3
        %vm1118 = vcmp.lt.s32.totalorder %v1117, 2
        %vm1119 = vcmp.eq.s32.totalorder %v1117, 0
        %v1120 = vxor.u32 %v1115, 2147483648
        %v1121 = vsel %vm1119, %v1114, %v1120
        %vm1122 = vcmp.eq.s32.totalorder %v1117, 2
        %v1123 = vxor.u32 %v1114, 2147483648
        %v1124 = vsel %vm1122, %v1123, %v1115
        %v1125 = vsel %vm1118, %v1121, %v1124
        %v1126 = vsel %vm1116, nan, %v1125
        %v1127 = vand.u32 2147483647, %v401
        %vm1128 = vcmp.le.f32.partialorder %v1127, 0.7853982
        %vm1129 = vcmp.lt.s32.totalorder %v401, 0
        %v1130 = vand.u32 %v401, 2139095040
        %v1131 = vshrl.u32 %v1130, 23
        %v1132 = vsub.s32 %v1131, 127
        %v1133 = vand.u32 2147483647, %v401
        %v1134 = vand.u32 %v1133, 8388607
        %v1135 = vor.u32 %v1134, 8388608
        %v1136 = vsub.s32 0, %v1135
        %v1137 = vadd.s32 %v1132, 1
        %vm1138 = vcmp.gt.s32.totalorder %v1137, 0
        %v1139 = vsel %vm1138, %v1137, 0
        %v1140 = vshrl.u32 %v1139, 5
        %v1141 = vand.u32 %v1139, 31
        %v1142 = vsub.s32 32, %v1141
        %v1143 = vshrl.u32 683565275, %v1142
        %v1144 = vshll.u32 683565275, %v1141
        %v1145 = vshrl.u32 2475754826, %v1142
        %v1146 = vor.u32 %v1144, %v1145
        %v1147 = vshll.u32 2475754826, %v1141
        %v1148 = vshrl.u32 2131351028, %v1142
        %v1149 = vor.u32 %v1147, %v1148
        %v1150 = vshll.u32 2131351028, %v1141
        %v1151 = vshrl.u32 2102212464, %v1142
        %v1152 = vor.u32 %v1150, %v1151
        %v1153 = vshll.u32 2102212464, %v1141
        %v1154 = vshrl.u32 920167782, %v1142
        %v1155 = vor.u32 %v1153, %v1154
        %v1156 = vshll.u32 920167782, %v1141
        %v1157 = vshrl.u32 1326507024, %v1142
        %v1158 = vor.u32 %v1156, %v1157
        %vm1159 = vcmp.lt.s32.totalorder %v1140, 1
        %vm1160 = vcmp.lt.s32.totalorder %v1140, 2
        %vm1161 = vcmp.lt.s32.totalorder %v1140, 3
        %vm1162 = vcmp.lt.s32.totalorder %v1140, 4
        %v1163 = vsel %vm1159, %v1143, %v1146
        %v1164 = vsel %vm1162, %v1152, 2102212464
        %v1165 = vsel %vm1161, %v1149, %v1164
        %v1166 = vsel %vm1160, %v1163, %v1165
        %v1167 = vsel %vm1159, %v1146, %v1149
        %v1168 = vsel %vm1162, %v1155, 920167782
        %v1169 = vsel %vm1161, %v1152, %v1168
        %v1170 = vsel %vm1160, %v1167, %v1169
        %v1171 = vsel %vm1159, %v1149, %v1152
        %v1172 = vsel %vm1162, %v1158, 1326507024
        %v1173 = vsel %vm1161, %v1155, %v1172
        %v1174 = vsel %vm1160, %v1171, %v1173
        %v1175 = vshll.u32 %v1135, 8
        %v1176 = vmul.u32.u64.compose %v1175, %v1174
        %v1177 = vextract.low.u32 %v1176
        %v1178 = vextract.high.u32 %v1176
        %v1179 = vmul.u32.u64.compose %v1175, %v1170
        %v1180 = vextract.low.u32 %v1179
        %v1181 = vextract.high.u32 %v1179
        %v1182 = vmul.u32 %v1175, %v1166
        %v1183 = vadd.s32 %v1178, %v1180
        %vm1184 = vc.u32 %v1178, %v1180
        %v1185 = vadd.s32 %v1181, 1
        %v1186 = vsel %vm1184, %v1185, %v1181
        %v1187 = vadd.s32 %v1182, %v1186
        %v1188 = vadd.s32 %v1187, 536870912
        %v1189 = vshrl.u32 %v1188, 30
        %v1190 = vshll.u32 %v1189, 30
        %v1191 = vsub.s32 %v1187, %v1190
        %vm1192 = vcmp.lt.s32.totalorder %v1191, 0
        %v1193 = vsub.s32 0, %v1191
        %v1194 = vsel %vm1192, %v1193, %v1191
        %v1195 = vclz %v1194
        %v1196 = vsub.s32 %v1195, 2
        %vm1197 = vcmp.gt.s32.totalorder 0, %v1196
        %v1198 = vsel %vm1197, 0, %v1196
        %v1199 = vsub.s32 32, %v1198
        %v1200 = vshll.u32 %v1191, %v1198
        %v1201 = vshrl.u32 %v1183, %v1199
        %v1202 = vor.u32 %v1200, %v1201
        %v1203 = vsub.s32 4294967266, %v1198
        %v1204 = vadd.s32 %v1203, 127
        %v1205 = vshll.u32 %v1204, 23
        %v1206 = vor.u32 4788187, %v1205
        %v1207 = vand.u32 2147483647, %v1206
        %v1209 = vcvt.s32.f32 %v1202
        %v1210 = vmul.f32 %v1209, %v1207
        %v1211 = vxor.u32 %v1210, 2147483648
        %v1212 = vsel %vm1129, %v1211, %v1210
        %v1213 = vsub.s32 4, %v1189
        %v1214 = vsel %vm1129, %v1213, %v1189
        %v1215 = vsel %vm1128, %v401, %v1212
        %v1216 = vsel %vm1128, 0, %v1214
        %v1217 = vcosq.f32.pop %v1215
        %v1218 = vsinq.f32.pop %v1215
        %vm1219 = vweird.f32 %v401
        %v1220 = vand.u32 %v1216, 3
        %vm1221 = vcmp.lt.s32.totalorder %v1220, 2
        %vm1222 = vcmp.eq.s32.totalorder %v1220, 0
        %v1223 = vxor.u32 %v1218, 2147483648
        %v1224 = vsel %vm1222, %v1217, %v1223
        %vm1225 = vcmp.eq.s32.totalorder %v1220, 2
        %v1226 = vxor.u32 %v1217, 2147483648
        %v1227 = vsel %vm1225, %v1226, %v1218
        %v1228 = vsel %vm1221, %v1224, %v1227
        %v1229 = vsel %vm1219, nan, %v1228
        %v1230 = vadd.f32 %v920, %v920
        %v1231 = vadd.f32 %v1023, %v1023
        %v1232 = vadd.f32 %v1126, %v1126
        %v1233 = vadd.f32 %v1229, %v1229
        %v1234 = vmul.f32 %v505, 0.63661975
        %v1235 = vmul.f32 %v609, 0.63661975
        %v1236 = vmul.f32 %v713, 0.63661975
        %v1237 = vmul.f32 %v817, 0.63661975
        %v1238 = vmul.f32 %v920, 0.63661975
        %v1239 = vmul.f32 %v1023, 0.63661975
        %v1240 = vmul.f32 %v1126, 0.63661975
        %v1241 = vmul.f32 %v1229, 0.63661975
        %v1242 = vmul.f32 %v1230, %v505
        %v1243 = vmul.f32 %v1231, %v609
        %v1244 = vmul.f32 %v1232, %v713
        %v1245 = vmul.f32 %v1233, %v817
        %v1246 = vmul.f32 %v1230, %v920
        %v1247 = vmul.f32 %v1231, %v1023
        %v1248 = vmul.f32 %v1232, %v1126
        %v1249 = vmul.f32 %v1233, %v1229
        %v1250 = vsub.f32 %v1246, 1.0
        %v1251 = vsub.f32 %v1247, 1.0
        %v1252 = vsub.f32 %v1248, 1.0
        %v1253 = vsub.f32 %v1249, 1.0
        %v1254 = vmul.f32 %v1242, -0.31830987
        %v1255 = vmul.f32 %v1243, -0.31830987
        %v1256 = vmul.f32 %v1244, -0.31830987
        %v1257 = vmul.f32 %v1245, -0.31830987
        %v1258 = vadd.f32 %v1234, %v1254
        %v1259 = vadd.f32 %v1235, %v1255
        %v1260 = vadd.f32 %v1236, %v1256
        %v1261 = vadd.f32 %v1237, %v1257
        %v1262 = vsub.f32 %v1238, %v1254
        %v1263 = vsub.f32 %v1239, %v1255
        %v1264 = vsub.f32 %v1240, %v1256
        %v1265 = vsub.f32 %v1241, %v1257
        %v1266 = vmul.f32 %v1230, %v1242
        %v1267 = vmul.f32 %v1231, %v1243
        %v1268 = vmul.f32 %v1232, %v1244
        %v1269 = vmul.f32 %v1233, %v1245
        %v1270 = vsub.f32 %v1266, %v505
        %v1271 = vsub.f32 %v1267, %v609
        %v1272 = vsub.f32 %v1268, %v713
        %v1273 = vsub.f32 %v1269, %v817
        %v1274 = vmul.f32 %v1230, %v1250
        %v1275 = vmul.f32 %v1231, %v1251
        %v1276 = vmul.f32 %v1232, %v1252
        %v1277 = vmul.f32 %v1233, %v1253
        %v1278 = vsub.f32 %v1274, %v920
        %v1279 = vsub.f32 %v1275, %v1023
        %v1280 = vsub.f32 %v1276, %v1126
        %v1281 = vsub.f32 %v1277, %v1229
        %v1282 = vmul.f32 %v1270, 0.21220659
        %v1283 = vmul.f32 %v1271, 0.21220659
        %v1284 = vmul.f32 %v1272, 0.21220659
        %v1285 = vmul.f32 %v1273, 0.21220659
        %v1286 = vadd.f32 %v1258, %v1282
        %v1287 = vadd.f32 %v1259, %v1283
        %v1288 = vadd.f32 %v1260, %v1284
        %v1289 = vadd.f32 %v1261, %v1285
        %v1290 = vmul.f32 %v1278, 0.21220659
        %v1291 = vmul.f32 %v1279, 0.21220659
        %v1292 = vmul.f32 %v1280, 0.21220659
        %v1293 = vmul.f32 %v1281, 0.21220659
        %v1294 = vsub.f32 %v1262, %v1290
        %v1295 = vsub.f32 %v1263, %v1291
        %v1296 = vsub.f32 %v1264, %v1292
        %v1297 = vsub.f32 %v1265, %v1293
        %v1298 = vmul.f32 %v1230, %v1270
        %v1299 = vmul.f32 %v1231, %v1271
        %v1300 = vmul.f32 %v1232, %v1272
        %v1301 = vmul.f32 %v1233, %v1273
        %v1302 = vsub.f32 %v1298, %v1242
        %v1303 = vsub.f32 %v1299, %v1243
        %v1304 = vsub.f32 %v1300, %v1244
        %v1305 = vsub.f32 %v1301, %v1245
        %v1306 = vmul.f32 %v1230, %v1278
        %v1307 = vmul.f32 %v1231, %v1279
        %v1308 = vmul.f32 %v1232, %v1280
        %v1309 = vmul.f32 %v1233, %v1281
        %v1310 = vsub.f32 %v1306, %v1250
        %v1311 = vsub.f32 %v1307, %v1251
        %v1312 = vsub.f32 %v1308, %v1252
        %v1313 = vsub.f32 %v1309, %v1253
        %v1314 = vmul.f32 %v1302, -0.15915494
        %v1315 = vmul.f32 %v1303, -0.15915494
        %v1316 = vmul.f32 %v1304, -0.15915494
        %v1317 = vmul.f32 %v1305, -0.15915494
        %v1318 = vadd.f32 %v1286, %v1314
        %v1319 = vadd.f32 %v1287, %v1315
        %v1320 = vadd.f32 %v1288, %v1316
        %v1321 = vadd.f32 %v1289, %v1317
        %v1322 = vadd.f32 %v1294, %v1314
        %v1323 = vadd.f32 %v1295, %v1315
        %v1324 = vadd.f32 %v1296, %v1316
        %v1325 = vadd.f32 %v1297, %v1317
        %v1326 = vmul.f32 %v1230, %v1302
        %v1327 = vmul.f32 %v1231, %v1303
        %v1328 = vmul.f32 %v1232, %v1304
        %v1329 = vmul.f32 %v1233, %v1305
        %v1330 = vsub.f32 %v1326, %v1270
        %v1331 = vsub.f32 %v1327, %v1271
        %v1332 = vsub.f32 %v1328, %v1272
        %v1333 = vsub.f32 %v1329, %v1273
        %v1334 = vmul.f32 %v1230, %v1310
        %v1335 = vmul.f32 %v1231, %v1311
        %v1336 = vmul.f32 %v1232, %v1312
        %v1337 = vmul.f32 %v1233, %v1313
        %v1338 = vsub.f32 %v1334, %v1278
        %v1339 = vsub.f32 %v1335, %v1279
        %v1340 = vsub.f32 %v1336, %v1280
        %v1341 = vsub.f32 %v1337, %v1281
        %v1342 = vmul.f32 %v1330, 0.12732396
        %v1343 = vmul.f32 %v1331, 0.12732396
        %v1344 = vmul.f32 %v1332, 0.12732396
        %v1345 = vmul.f32 %v1333, 0.12732396
        %v1346 = vadd.f32 %v1318, %v1342
        %v1347 = vadd.f32 %v1319, %v1343
        %v1348 = vadd.f32 %v1320, %v1344
        %v1349 = vadd.f32 %v1321, %v1345
        %v1350 = vmul.f32 %v1338, 0.12732396
        %v1351 = vmul.f32 %v1339, 0.12732396
        %v1352 = vmul.f32 %v1340, 0.12732396
        %v1353 = vmul.f32 %v1341, 0.12732396
        %v1354 = vadd.f32 %v1322, %v1350
        %v1355 = vadd.f32 %v1323, %v1351
        %v1356 = vadd.f32 %v1324, %v1352
        %v1357 = vadd.f32 %v1325, %v1353
        %v1358 = vmul.f32 %v1230, %v1330
        %v1359 = vmul.f32 %v1231, %v1331
        %v1360 = vmul.f32 %v1232, %v1332
        %v1361 = vmul.f32 %v1233, %v1333
        %v1362 = vsub.f32 %v1358, %v1302
        %v1363 = vsub.f32 %v1359, %v1303
        %v1364 = vsub.f32 %v1360, %v1304
        %v1365 = vsub.f32 %v1361, %v1305
        %v1366 = vmul.f32 %v1230, %v1338
        %v1367 = vmul.f32 %v1231, %v1339
        %v1368 = vmul.f32 %v1232, %v1340
        %v1369 = vmul.f32 %v1233, %v1341
        %v1370 = vsub.f32 %v1366, %v1310
        %v1371 = vsub.f32 %v1367, %v1311
        %v1372 = vsub.f32 %v1368, %v1312
        %v1373 = vsub.f32 %v1369, %v1313
        %v1374 = vmul.f32 %v1362, -0.10610329
        %v1375 = vmul.f32 %v1363, -0.10610329
        %v1376 = vmul.f32 %v1364, -0.10610329
        %v1377 = vmul.f32 %v1365, -0.10610329
        %v1378 = vadd.f32 %v1346, %v1374
        %v1379 = vadd.f32 %v1347, %v1375
        %v1380 = vadd.f32 %v1348, %v1376
        %v1381 = vadd.f32 %v1349, %v1377
        %v1382 = vsub.f32 %v1354, %v1374
        %v1383 = vsub.f32 %v1355, %v1375
        %v1384 = vsub.f32 %v1356, %v1376
        %v1385 = vsub.f32 %v1357, %v1377
        %v1386 = vmul.f32 %v1230, %v1362
        %v1387 = vmul.f32 %v1231, %v1363
        %v1388 = vmul.f32 %v1232, %v1364
        %v1389 = vmul.f32 %v1233, %v1365
        %v1390 = vsub.f32 %v1386, %v1330
        %v1391 = vsub.f32 %v1387, %v1331
        %v1392 = vsub.f32 %v1388, %v1332
        %v1393 = vsub.f32 %v1389, %v1333
        %v1394 = vmul.f32 %v1230, %v1370
        %v1395 = vmul.f32 %v1231, %v1371
        %v1396 = vmul.f32 %v1232, %v1372
        %v1397 = vmul.f32 %v1233, %v1373
        %v1398 = vsub.f32 %v1394, %v1338
        %v1399 = vsub.f32 %v1395, %v1339
        %v1400 = vsub.f32 %v1396, %v1340
        %v1401 = vsub.f32 %v1397, %v1341
        %v1402 = vmul.f32 %v1390, 0.09094568
        %v1403 = vmul.f32 %v1391, 0.09094568
        %v1404 = vmul.f32 %v1392, 0.09094568
        %v1405 = vmul.f32 %v1393, 0.09094568
        %v1406 = vadd.f32 %v1378, %v1402
        %v1407 = vadd.f32 %v1379, %v1403
        %v1408 = vadd.f32 %v1380, %v1404
        %v1409 = vadd.f32 %v1381, %v1405
        %v1410 = vmul.f32 %v1398, 0.09094568
        %v1411 = vmul.f32 %v1399, 0.09094568
        %v1412 = vmul.f32 %v1400, 0.09094568
        %v1413 = vmul.f32 %v1401, 0.09094568
        %v1414 = vsub.f32 %v1382, %v1410
        %v1415 = vsub.f32 %v1383, %v1411
        %v1416 = vsub.f32 %v1384, %v1412
        %v1417 = vsub.f32 %v1385, %v1413
        %v1418 = vmul.f32 %v1230, %v1390
        %v1419 = vmul.f32 %v1231, %v1391
        %v1420 = vmul.f32 %v1232, %v1392
        %v1421 = vmul.f32 %v1233, %v1393
        %v1422 = vsub.f32 %v1418, %v1362
        %v1423 = vsub.f32 %v1419, %v1363
        %v1424 = vsub.f32 %v1420, %v1364
        %v1425 = vsub.f32 %v1421, %v1365
        %v1426 = vmul.f32 %v1422, -0.07957747
        %v1427 = vmul.f32 %v1423, -0.07957747
        %v1428 = vmul.f32 %v1424, -0.07957747
        %v1429 = vmul.f32 %v1425, -0.07957747
        %v1430 = vadd.f32 %v1406, %v1426
        %v1431 = vadd.f32 %v1407, %v1427
        %v1432 = vadd.f32 %v1408, %v1428
        %v1433 = vadd.f32 %v1409, %v1429
        %v1434 = vadd.f32 %v1414, %v1426
        %v1435 = vadd.f32 %v1415, %v1427
        %v1436 = vadd.f32 %v1416, %v1428
        %v1437 = vadd.f32 %v1417, %v1429
        %v1438 = vmul.f32 %v370, -0.012665148
        %v1439 = vmul.f32 %v371, -0.012665148
        %v1440 = vmul.f32 %v372, -0.012665148
        %v1441 = vmul.f32 %v373, -0.012665148
        %v1442 = vmul.f32 %v1438, 1.442695
        %v1443 = vpow.pop %v1442
        %v1444 = vmul.f32 %v1439, 1.442695
        %v1445 = vpow.pop %v1444
        %v1446 = vmul.f32 %v1440, 1.442695
        %v1447 = vpow.pop %v1446
        %v1448 = vmul.f32 %v1441, 1.442695
        %v1449 = vpow.pop %v1448
        %v1450 = vmul.f32 %v1430, %v1443
        %v1451 = vmul.f32 %v1431, %v1445
        %v1452 = vmul.f32 %v1432, %v1447
        %v1453 = vmul.f32 %v1433, %v1449
        %v1454 = vld [vmem:[%s251] sm:$0x7]
        %vm1455 = vcmask 523264
        %v1457 = vsel %vm1455, %v273, 0
        %1459 = vmatprep.subr.mxu0 0.0
        %1460 = vmatpush1.msra.mxu0 0.0
        %1461 = vmatprep.subr.mxu0 0.0
        %1462 = vmatpush1.msra.mxu0 0.0
        %1463 = vmatprep.subr.mxu0 0.0
        %1464 = vmatpush1.msra.mxu0 0.0
        %1465 = vmatprep.subr.mxu0 0.0
        %1466 = vmatpush1.msra.mxu0 0.0
        %1467 = vmatprep.subr.mxu0 0.0
        %1468 = vmatpush1.msra.mxu0 0.0
        %1469 = vmatprep.subr.mxu0 0.0
        %1470 = vmatpush1.msra.mxu0 0.0
        %1471 = vmatprep.subr.mxu0 0.0
        %1472 = vmatpush1.msra.mxu0 0.0
        %1473 = vmatprep.subr.mxu0 0.0
        %1474 = vmatpush1.msra.mxu0 0.0
        %1475 = vmatprep.subr.mxu0 0.0
        %1476 = vmatpush1.msra.mxu0 %v1437
        %1477 = vmatprep.subr.mxu0 0.0
        %1478 = vmatpush1.msra.mxu0 %v1436
        %1479 = vmatprep.subr.mxu0 0.0
        %1480 = vmatpush1.msra.mxu0 %v1435
        %1481 = vmatprep.subr.mxu0 0.0
        %1482 = vmatpush1.msra.mxu0 %v1434
        %1483 = vmatprep.subr.mxu0 0.0
        %1484 = vmatpush1.msra.mxu0 %v1453
        %1485 = vmatprep.subr.mxu0 0.0
        %1486 = vmatpush1.msra.mxu0 %v1452
        %1487 = vmatprep.subr.mxu0 0.0
        %1488 = vmatpush1.msra.mxu0 %v1451
        %1489 = vmatprep.subr.mxu0 0.0
        %1490 = vmatpush1.msra.mxu0 %v1450
        %1491 = vmatprep.subr.mxu0 0.0
        %1492 = vmatpush2.msra.mxu0 0.0
        %1493 = vmatprep.subr.mxu0 0.0
        %1494 = vmatpush2.msra.mxu0 0.0
        %1495 = vmatprep.subr.mxu0 0.0
        %1496 = vmatpush2.msra.mxu0 0.0
        %1497 = vmatprep.subr.mxu0 0.0
        %1498 = vmatpush2.msra.mxu0 0.0
        %1499 = vmatprep.subr.mxu0 0.0
        %1500 = vmatpush2.msra.mxu0 0.0
        %1501 = vmatprep.subr.mxu0 0.0
        %1502 = vmatpush2.msra.mxu0 0.0
        %1503 = vmatprep.subr.mxu0 0.0
        %1504 = vmatpush2.msra.mxu0 0.0
        %1505 = vmatprep.subr.mxu0 0.0
        %1506 = vmatpush2.msra.mxu0 0.0
        %1507 = vmatprep.subr.mxu0 0.0
        %1508 = vmatpush2.msra.mxu0 0.0
        %1509 = vmatprep.subr.mxu0 0.0
        %1510 = vmatpush2.msra.mxu0 0.0
        %1511 = vmatprep.subr.mxu0 0.0
        %1512 = vmatpush2.msra.mxu0 0.0
        %1513 = vmatprep.subr.mxu0 0.0
        %1514 = vmatpush2.msra.mxu0 0.0
        %1515 = vmatprep.subr.mxu0 0.0
        %1516 = vmatpush2.msra.mxu0 0.0
        %1517 = vmatprep.subr.mxu0 0.0
        %1518 = vmatpush2.msra.mxu0 0.0
        %1519 = vmatprep.subr.mxu0 0.0
        %1520 = vmatpush2.msra.mxu0 0.0
        %1521 = vmatprep.subr.mxu0 0.0
        %1522 = vmatpush2.msra.mxu0 0.0
        %1523 = vmatprep.mubr.f32.mxu0 0.0
        %1524 = vmatmul.mubr.f32.gmra.mxu0 %v1457
        %v1525 = vpop.f32.mrf.mxu0
        %v1526 = vadd.f32 0.0, %v1525
        %v1527 = vpop.f32.mrf.mxu0
        %1528 = vdwg.mxu0
        %v1529 = vadd.f32 %v1454, %v1526
        %1530 = vst [vmem:[%s251] sm:$0x7] %v1529
        %v1531 = vld [vmem:[%s251] sm:$0x7]
        %vm1532 = vcmp.le.f32.partialorder %v1531, -1.0
        %v1533 = vadd.f32 %v1531, 1.0
        %v1534 = vmul.f32 %v1533, 0.01
        %v1535 = vsub.f32 %v1534, 1.0
        %vm1536 = vcmp.gt.f32.partialorder %v1531, 1.0
        %v1537 = vsub.f32 %v1531, 1.0
        %v1538 = vmul.f32 %v1537, 0.01
        %v1539 = vadd.f32 %v1538, 1.0
        %v1540 = vsel %vm1536, %v1539, %v1531
        %v1541 = vsel %vm1532, %v1535, %v1540
        %v1542 = vadd.f32 %v1541, 1.0
        %v1543 = vmul.f32 %v1542, 0.5
        %v1544 = vmul.f32 %v1531, 0.01
        %v1545 = vmax.f32 %v1543, %v1544
        %1546 = vst [vmem:[%s251] sm:$0x7] %v1545
        %s1547 = sand.u32 %s164, 1
        %s1548 = scalar_lea.sflag [#allocation3], %s1547
        %s1549 = sand.u32 %s164, 1
        %s1550 = smul.addr %s1549, 4
        %s1551 = scalar_lea.vmem [#allocation2], %s1550
        // Predicated region
        $region45: #{tpu_custom_call.1} parent=43 // pred_check
          %p1552 = pneg %p174
        $region46: #{tpu_custom_call.1} parent=43 // pred_check_branch
          %1554 = sbr.rel (%p1552) target = $region48
        $region47: #{tpu_custom_call.1} parent=43 // pred_region
          %s1556 = ssub.s32 64, 64
          %1557 = vsyncadd %s1548, %s1556
          %s1558 = smul.addr %s20, 64
          %s1559 = scalar_lea.hbm %s6, %s1558
          %s1561 = sshll.u32 %s1551, 4
          %s1562 = int_to_ptr.vmem [resolvable:$true] %s1561
          %1564 = dma.vmem_to_hbm [thread:$0]  %s1562, 64, %s1559, %s1548
        $region48: #{tpu_custom_call.1} parent=43 // pred_fallthru
          _
      $region44: #{tpu_custom_call.1} parent=5 // pred_fallthru
        _
      %p1565 = scmp.le.s32.totalorder 2, %s15
      // Predicated region
      $region49: #{tpu_custom_call.1} parent=5 // pred_check
        %p1566 = pneg %p1565
      $region50: #{tpu_custom_call.1} parent=5 // pred_check_branch
        %1568 = sbr.rel (%p1566) target = $region52
      $region51: #{tpu_custom_call.1} parent=5 // pred_region
        %s1569 = ssub.s32 %s15, 2
        // Predicated region
        $region53: #{tpu_custom_call.1} parent=51 // pred_check
          %p1570 = pneg %p180
        $region54: #{tpu_custom_call.1} parent=51 // pred_check_branch
          %1572 = sbr.rel (%p1570) target = $region56
        $region55: #{tpu_custom_call.1} parent=51 // pred_region
          %s1573 = sand.u32 %s165, 1
          %s1574 = scalar_lea.sflag [#allocation3], %s1573
          %s1575 = sand.u32 %s165, 1
          %s1576 = smul.addr %s1575, 4
          %s1577 = scalar_lea.vmem [#allocation2], %s1576
          %1578 = dma.done %s1574, 64
        $region56: #{tpu_custom_call.1} parent=51 // pred_fallthru
          _
      $region52: #{tpu_custom_call.1} parent=5 // pred_fallthru
        _
    $region6: #{tpu_custom_call.1} parent=1 // loop_footer
      %s19 = sadd.s32 1, %s15
    $region7: #{tpu_custom_call.1} parent=1 // loop_footer_branch
      %14 = sbr.rel target = $region3
    $region8: #{tpu_custom_call.1} parent=1 // loop_exit
      _
    %1579 = vsyncpa [#allocation3], 1
    %s1580 = scalar_lea.sflag [#allocation3], 1
    %1581 = vsyncpa %s1580, 1

</llo_original>
